<compile_context>
chip_gen: v7x
topology: tpu7x:2x2x1
jax: 0.10.0
libtpu: 0.0.40
codegen_flags: <defaults>
</compile_context>

<pallas_src>
import functools

import jax
import jax.numpy as jnp
from jax.experimental import pallas as pl
from jax.experimental.pallas import tpu as pltpu


def _encoder_kernel(x_ref,
                    w1_ref, b1_ref,
                    w2_ref, b2_ref,
                    w3_ref, b3_ref,
                    whead_ref, bhead_ref,
                    means_ref, vars_ref,
                    *, latent_dim):
    # Elementwise math in f32; MXU operands in bf16 with f32 accumulation.
    x = jnp.log1p(x_ref[...].astype(jnp.float32))

    h = jnp.dot(x.astype(jnp.bfloat16), w1_ref[...],
                preferred_element_type=jnp.float32) + b1_ref[...]
    h = jnp.maximum(h, 0.0)

    h = jnp.dot(h.astype(jnp.bfloat16), w2_ref[...],
                preferred_element_type=jnp.float32) + b2_ref[...]
    h = jnp.maximum(h, 0.0)

    h = jnp.dot(h.astype(jnp.bfloat16), w3_ref[...],
                preferred_element_type=jnp.float32) + b3_ref[...]
    h = jnp.maximum(h, 0.0)

    # Fused mean/var heads: one N = 2*latent matmul, split columns afterwards.
    z = jnp.dot(h.astype(jnp.bfloat16), whead_ref[...],
                preferred_element_type=jnp.float32) + bhead_ref[...]
    z_means = z[:, :latent_dim]
    z_log_vars = z[:, latent_dim:]

    means_ref[...] = z_means.astype(means_ref.dtype)
    # var_transformation(x) = sqrt(exp(x)) = exp(0.5 * x)
    vars_ref[...] = jnp.exp(0.5 * z_log_vars).astype(vars_ref.dtype)


def _round_up(n, m):
    return (n + m - 1) // m * m


def gaussian_counts_encoder(x, params, *, tile_b=256):
    """x: (B, input_dim) float32 counts. params: dict of f32 weights/biases.

    Weights are cast to bf16 for the MXU; accumulation and elementwise math
    stay in f32. Returns (z_means, z_vars), both (B, latent) float32.
    """
    B, input_dim = x.shape

    w1 = params["w1"].astype(jnp.bfloat16)
    w2 = params["w2"].astype(jnp.bfloat16)
    w3 = params["w3"].astype(jnp.bfloat16)
    b1 = params["b1"].astype(jnp.float32)
    b2 = params["b2"].astype(jnp.float32)
    b3 = params["b3"].astype(jnp.float32)

    h1 = w1.shape[1]
    h2 = w2.shape[1]
    h3 = w3.shape[1]
    latent = params["wm"].shape[1]

    # Fuse mean/var heads into one (h3, 2*latent) weight / (1, 2*latent) bias.
    w_head = jnp.concatenate([params["wm"], params["wv"]], axis=1).astype(jnp.bfloat16)
    b_head = jnp.concatenate([params["bm"], params["bv"]], axis=1).astype(jnp.float32)
    head_n = 2 * latent

    # Don't over-tile tiny batches; keep tile_b a multiple of 8 (sublanes).
    tile_b = max(8, min(tile_b, _round_up(B, 8)))
    b_pad = _round_up(B, tile_b)
    if b_pad != B:
        # Zero padding is safe: log1p(0)=0 and rows are independent.
        x = jnp.pad(x, ((0, b_pad - B), (0, 0)))

    grid = (b_pad // tile_b,)

    def row_map(i):
        return (i, 0)

    def full_map(i):
        return (0, 0)

    # Advisory cost hint for XLA's scheduler around the custom call.
    flops = 2 * b_pad * (input_dim * h1 + h1 * h2 + h2 * h3 + h3 * head_n)
    transcendentals = b_pad * (input_dim + latent)          # log1p + exp
    bytes_accessed = 4 * (b_pad * input_dim + 2 * b_pad * latent) + 2 * (
        input_dim * h1 + h1 * h2 + h2 * h3 + h3 * head_n)

    out_means, out_vars = pl.pallas_call(
        functools.partial(_encoder_kernel, latent_dim=latent),
        out_shape=(
            jax.ShapeDtypeStruct((b_pad, latent), jnp.float32),
            jax.ShapeDtypeStruct((b_pad, latent), jnp.float32),
        ),
        grid_spec=pltpu.PrefetchScalarGridSpec(
            num_scalar_prefetch=0,
            grid=grid,
            in_specs=[
                pl.BlockSpec((tile_b, input_dim), row_map),   # x tile
                pl.BlockSpec((input_dim, h1), full_map),      # w1 (VMEM-resident)
                pl.BlockSpec((1, h1), full_map),              # b1
                pl.BlockSpec((h1, h2), full_map),             # w2
                pl.BlockSpec((1, h2), full_map),              # b2
                pl.BlockSpec((h2, h3), full_map),              # w3
                pl.BlockSpec((1, h3), full_map),              # b3
                pl.BlockSpec((h3, head_n), full_map),         # fused wm|wv
                pl.BlockSpec((1, head_n), full_map),          # fused bm|bv
            ],
            out_specs=[
                pl.BlockSpec((tile_b, latent), row_map),      # z_means
                pl.BlockSpec((tile_b, latent), row_map),      # z_vars
            ],
        ),
        compiler_params=pltpu.CompilerParams(
            dimension_semantics=("parallel",),                # megacore on v7x
            vmem_limit_bytes=64 << 20,                        # headroom for big tiles
        ),
        cost_estimate=pl.CostEstimate(
            flops=flops,
            transcendentals=transcendentals,
            bytes_accessed=bytes_accessed,
        ),
    )(x, w1, b1, w2, b2, w3, b3, w_head, b_head)

    if b_pad != B:
        out_means = out_means[:B]
        out_vars = out_vars[:B]
    return out_means, out_vars


def init_params(key, input_dim, layers_dims, latent_dim):
    """Deterministic synthetic init (nn.Linear shapes, stored (in, out))."""
    dims = [
        ("w1", "b1", input_dim, layers_dims[0]),
        ("w2", "b2", layers_dims[0], layers_dims[1]),
        ("w3", "b3", layers_dims[1], layers_dims[2]),
        ("wm", "bm", layers_dims[2], latent_dim),
        ("wv", "bv", layers_dims[2], latent_dim),
    ]
    params = {}
    for wname, bname, fin, fout in dims:
        key, kw, kb = jax.random.split(key, 3)
        bound = 1.0 / (fin ** 0.5)
        params[wname] = jax.random.uniform(
            kw, (fin, fout), jnp.float32, minval=-bound, maxval=bound)
        params[bname] = jax.random.uniform(
            kb, (1, fout), jnp.float32, minval=-bound, maxval=bound)
    return params


def reference_forward(x, params):
    """Plain-JAX f32 reference for correctness checking."""
    h = jnp.log1p(x)
    h = jnp.maximum(h @ params["w1"] + params["b1"], 0.0)
    h = jnp.maximum(h @ params["w2"] + params["b2"], 0.0)
    h = jnp.maximum(h @ params["w3"] + params["b3"], 0.0)
    z_means = h @ params["wm"] + params["bm"]
    z_log_vars = h @ params["wv"] + params["bv"]
    return z_means, jnp.exp(0.5 * z_log_vars)


if __name__ == "__main__":
    key = jax.random.PRNGKey(0)

    # Small shapes consistent with the module (kept (8,128)-tile friendly).
    # batch=512 with tile_b=256 -> 2-step parallel grid (uses both TCs on v7x).
    batch = 512
    input_dim = 256
    layers_dims = (128, 128, 128)
    latent_dim = 128

    key, kx, kp = jax.random.split(key, 3)
    # Counts-like non-negative input (log1p expects counts).
    x = jax.random.uniform(kx, (batch, input_dim), jnp.float32, 0.0, 10.0)
    params = init_params(kp, input_dim, layers_dims, latent_dim)

    z_means, z_vars = gaussian_counts_encoder(x, params, tile_b=256)
    jax.block_until_ready((z_means, z_vars))

    # bf16 MXU operands (f32 accumulation) -> loosened tolerance vs f32 reference.
    ref_means, ref_vars = reference_forward(x, params)
    assert z_means.shape == ref_means.shape and z_vars.shape == ref_vars.shape
    assert jnp.allclose(z_means, ref_means, atol=5e-2, rtol=5e-2), (
        float(jnp.max(jnp.abs(z_means - ref_means))))
    assert jnp.allclose(z_vars, ref_vars, atol=5e-2, rtol=5e-2), (
        float(jnp.max(jnp.abs(z_vars - ref_vars))))

    print("KERNEL_OK")
</pallas_src>

<mosaic_0001>
module attributes {stable_mosaic.version = 11 : i64} {
  func.func @_encoder_kernel(%arg0: i32, %arg1: memref<256x256xf32, #tpu.memory_space<vmem>>, %arg2: memref<256x128xbf16, #tpu.memory_space<vmem>>, %arg3: memref<1x128xf32, #tpu.memory_space<vmem>>, %arg4: memref<128x128xbf16, #tpu.memory_space<vmem>>, %arg5: memref<1x128xf32, #tpu.memory_space<vmem>>, %arg6: memref<128x128xbf16, #tpu.memory_space<vmem>>, %arg7: memref<1x128xf32, #tpu.memory_space<vmem>>, %arg8: memref<128x256xbf16, #tpu.memory_space<vmem>>, %arg9: memref<1x256xf32, #tpu.memory_space<vmem>>, %arg10: memref<256x128xf32, #tpu.memory_space<vmem>>, %arg11: memref<256x128xf32, #tpu.memory_space<vmem>>) attributes {dimension_semantics = [#tpu.dimension_semantics<parallel>], iteration_bounds = array<i64: 2>, scalar_prefetch = 0 : i64, scratch_operands = 0 : i64, tpu.core_type = #tpu.core_type<tc>, window_params = [{transform_indices = @transform_0, window_bounds = array<i64: 256, 256>}, {pipeline_mode = #tpu.pipeline_mode<synchronous>, transform_indices = @transform_1, window_bounds = array<i64: 256, 128>}, {pipeline_mode = #tpu.pipeline_mode<synchronous>, transform_indices = @transform_2, window_bounds = array<i64: 1, 128>}, {pipeline_mode = #tpu.pipeline_mode<synchronous>, transform_indices = @transform_3, window_bounds = array<i64: 128, 128>}, {pipeline_mode = #tpu.pipeline_mode<synchronous>, transform_indices = @transform_4, window_bounds = array<i64: 1, 128>}, {pipeline_mode = #tpu.pipeline_mode<synchronous>, transform_indices = @transform_5, window_bounds = array<i64: 128, 128>}, {pipeline_mode = #tpu.pipeline_mode<synchronous>, transform_indices = @transform_6, window_bounds = array<i64: 1, 128>}, {pipeline_mode = #tpu.pipeline_mode<synchronous>, transform_indices = @transform_7, window_bounds = array<i64: 128, 256>}, {pipeline_mode = #tpu.pipeline_mode<synchronous>, transform_indices = @transform_8, window_bounds = array<i64: 1, 256>}, {transform_indices = @transform_9, window_bounds = array<i64: 256, 128>}, {transform_indices = @transform_10, window_bounds = array<i64: 256, 128>}]} {
    %c0 = arith.constant 0 : index
    %c0_0 = arith.constant 0 : index
    %0 = vector.load %arg1[%c0, %c0_0] : memref<256x256xf32, #tpu.memory_space<vmem>>, vector<256x256xf32>
    %1 = math.log1p %0 : vector<256x256xf32>
    %2 = arith.truncf %1 : vector<256x256xf32> to vector<256x256xbf16>
    %c0_1 = arith.constant 0 : index
    %c0_2 = arith.constant 0 : index
    %3 = vector.load %arg2[%c0_1, %c0_2] : memref<256x128xbf16, #tpu.memory_space<vmem>>, vector<256x128xbf16>
    %cst = arith.constant dense<0.000000e+00> : vector<256x128xf32>
    %4 = tpu.matmul %2, %3, %cst {dimension_numbers = #tpu.dot_dimension_numbers<[1], [0], [0], [1], [0, 0, 1, 1], [], []>} : vector<256x256xbf16>, vector<256x128xbf16>, vector<256x128xf32> -> vector<256x128xf32>
    %c0_3 = arith.constant 0 : index
    %c0_4 = arith.constant 0 : index
    %5 = vector.load %arg3[%c0_3, %c0_4] : memref<1x128xf32, #tpu.memory_space<vmem>>, vector<1x128xf32>
    %6 = vector.broadcast %5 : vector<1x128xf32> to vector<256x128xf32>
    %7 = arith.addf %4, %6 : vector<256x128xf32>
    %cst_5 = arith.constant 0.000000e+00 : f32
    %8 = vector.broadcast %cst_5 : f32 to vector<256x128xf32>
    %9 = arith.maximumf %7, %8 : vector<256x128xf32>
    %10 = arith.truncf %9 : vector<256x128xf32> to vector<256x128xbf16>
    %c0_6 = arith.constant 0 : index
    %c0_7 = arith.constant 0 : index
    %11 = vector.load %arg4[%c0_6, %c0_7] : memref<128x128xbf16, #tpu.memory_space<vmem>>, vector<128x128xbf16>
    %cst_8 = arith.constant dense<0.000000e+00> : vector<256x128xf32>
    %12 = tpu.matmul %10, %11, %cst_8 {dimension_numbers = #tpu.dot_dimension_numbers<[1], [0], [0], [1], [0, 0, 1, 1], [], []>} : vector<256x128xbf16>, vector<128x128xbf16>, vector<256x128xf32> -> vector<256x128xf32>
    %c0_9 = arith.constant 0 : index
    %c0_10 = arith.constant 0 : index
    %13 = vector.load %arg5[%c0_9, %c0_10] : memref<1x128xf32, #tpu.memory_space<vmem>>, vector<1x128xf32>
    %14 = vector.broadcast %13 : vector<1x128xf32> to vector<256x128xf32>
    %15 = arith.addf %12, %14 : vector<256x128xf32>
    %cst_11 = arith.constant 0.000000e+00 : f32
    %16 = vector.broadcast %cst_11 : f32 to vector<256x128xf32>
    %17 = arith.maximumf %15, %16 : vector<256x128xf32>
    %18 = arith.truncf %17 : vector<256x128xf32> to vector<256x128xbf16>
    %c0_12 = arith.constant 0 : index
    %c0_13 = arith.constant 0 : index
    %19 = vector.load %arg6[%c0_12, %c0_13] : memref<128x128xbf16, #tpu.memory_space<vmem>>, vector<128x128xbf16>
    %cst_14 = arith.constant dense<0.000000e+00> : vector<256x128xf32>
    %20 = tpu.matmul %18, %19, %cst_14 {dimension_numbers = #tpu.dot_dimension_numbers<[1], [0], [0], [1], [0, 0, 1, 1], [], []>} : vector<256x128xbf16>, vector<128x128xbf16>, vector<256x128xf32> -> vector<256x128xf32>
    %c0_15 = arith.constant 0 : index
    %c0_16 = arith.constant 0 : index
    %21 = vector.load %arg7[%c0_15, %c0_16] : memref<1x128xf32, #tpu.memory_space<vmem>>, vector<1x128xf32>
    %22 = vector.broadcast %21 : vector<1x128xf32> to vector<256x128xf32>
    %23 = arith.addf %20, %22 : vector<256x128xf32>
    %cst_17 = arith.constant 0.000000e+00 : f32
    %24 = vector.broadcast %cst_17 : f32 to vector<256x128xf32>
    %25 = arith.maximumf %23, %24 : vector<256x128xf32>
    %26 = arith.truncf %25 : vector<256x128xf32> to vector<256x128xbf16>
    %c0_18 = arith.constant 0 : index
    %c0_19 = arith.constant 0 : index
    %27 = vector.load %arg8[%c0_18, %c0_19] : memref<128x256xbf16, #tpu.memory_space<vmem>>, vector<128x256xbf16>
    %cst_20 = arith.constant dense<0.000000e+00> : vector<256x256xf32>
    %28 = tpu.matmul %26, %27, %cst_20 {dimension_numbers = #tpu.dot_dimension_numbers<[1], [0], [0], [1], [0, 0, 1, 1], [], []>} : vector<256x128xbf16>, vector<128x256xbf16>, vector<256x256xf32> -> vector<256x256xf32>
    %c0_21 = arith.constant 0 : index
    %c0_22 = arith.constant 0 : index
    %29 = vector.load %arg9[%c0_21, %c0_22] : memref<1x256xf32, #tpu.memory_space<vmem>>, vector<1x256xf32>
    %30 = vector.broadcast %29 : vector<1x256xf32> to vector<256x256xf32>
    %31 = arith.addf %28, %30 : vector<256x256xf32>
    %32 = vector.extract_strided_slice %31 {offsets = [0, 0], sizes = [256, 128], strides = [1, 1]} : vector<256x256xf32> to vector<256x128xf32>
    %33 = vector.extract_strided_slice %31 {offsets = [0, 128], sizes = [256, 128], strides = [1, 1]} : vector<256x256xf32> to vector<256x128xf32>
    %c0_23 = arith.constant 0 : index
    %c0_24 = arith.constant 0 : index
    %34 = vector.load %arg10[%c0_23, %c0_24] : memref<256x128xf32, #tpu.memory_space<vmem>>, vector<256x128xf32>
    tpu.vector_store %arg10[%c0_23, %c0_24], %32 {strides = array<i32>} : memref<256x128xf32, #tpu.memory_space<vmem>>, vector<256x128xf32>,
    %cst_25 = arith.constant 5.000000e-01 : f32
    %35 = vector.broadcast %cst_25 : f32 to vector<256x128xf32>
    %36 = arith.mulf %35, %33 : vector<256x128xf32>
    %37 = math.exp %36 : vector<256x128xf32>
    %c0_26 = arith.constant 0 : index
    %c0_27 = arith.constant 0 : index
    %38 = vector.load %arg11[%c0_26, %c0_27] : memref<256x128xf32, #tpu.memory_space<vmem>>, vector<256x128xf32>
    tpu.vector_store %arg11[%c0_26, %c0_27], %37 {strides = array<i32>} : memref<256x128xf32, #tpu.memory_space<vmem>>, vector<256x128xf32>,
    return
  }
  func.func @transform_0(%arg0: i32) -> (i32, i32) {
    %c0_i32 = arith.constant 0 : i32
    %c0_i32_0 = arith.constant 0 : i32
    return %arg0, %c0_i32 : i32, i32
  }
  func.func @transform_1(%arg0: i32) -> (i32, i32) {
    %c0_i32 = arith.constant 0 : i32
    %c0_i32_0 = arith.constant 0 : i32
    %c0_i32_1 = arith.constant 0 : i32
    return %c0_i32, %c0_i32_0 : i32, i32
  }
  func.func @transform_2(%arg0: i32) -> (i32, i32) {
    %c0_i32 = arith.constant 0 : i32
    %c0_i32_0 = arith.constant 0 : i32
    %c0_i32_1 = arith.constant 0 : i32
    return %c0_i32, %c0_i32_0 : i32, i32
  }
  func.func @transform_3(%arg0: i32) -> (i32, i32) {
    %c0_i32 = arith.constant 0 : i32
    %c0_i32_0 = arith.constant 0 : i32
    %c0_i32_1 = arith.constant 0 : i32
    return %c0_i32, %c0_i32_0 : i32, i32
  }
  func.func @transform_4(%arg0: i32) -> (i32, i32) {
    %c0_i32 = arith.constant 0 : i32
    %c0_i32_0 = arith.constant 0 : i32
    %c0_i32_1 = arith.constant 0 : i32
    return %c0_i32, %c0_i32_0 : i32, i32
  }
  func.func @transform_5(%arg0: i32) -> (i32, i32) {
    %c0_i32 = arith.constant 0 : i32
    %c0_i32_0 = arith.constant 0 : i32
    %c0_i32_1 = arith.constant 0 : i32
    return %c0_i32, %c0_i32_0 : i32, i32
  }
  func.func @transform_6(%arg0: i32) -> (i32, i32) {
    %c0_i32 = arith.constant 0 : i32
    %c0_i32_0 = arith.constant 0 : i32
    %c0_i32_1 = arith.constant 0 : i32
    return %c0_i32, %c0_i32_0 : i32, i32
  }
  func.func @transform_7(%arg0: i32) -> (i32, i32) {
    %c0_i32 = arith.constant 0 : i32
    %c0_i32_0 = arith.constant 0 : i32
    %c0_i32_1 = arith.constant 0 : i32
    return %c0_i32, %c0_i32_0 : i32, i32
  }
  func.func @transform_8(%arg0: i32) -> (i32, i32) {
    %c0_i32 = arith.constant 0 : i32
    %c0_i32_0 = arith.constant 0 : i32
    %c0_i32_1 = arith.constant 0 : i32
    return %c0_i32, %c0_i32_0 : i32, i32
  }
  func.func @transform_9(%arg0: i32) -> (i32, i32) {
    %c0_i32 = arith.constant 0 : i32
    %c0_i32_0 = arith.constant 0 : i32
    return %arg0, %c0_i32 : i32, i32
  }
  func.func @transform_10(%arg0: i32) -> (i32, i32) {
    %c0_i32 = arith.constant 0 : i32
    %c0_i32_0 = arith.constant 0 : i32
    return %arg0, %c0_i32 : i32, i32
  }
}

</mosaic_0001>

<llo_original>
// kernel: tpu_custom_call.1
$region0: #{tpu_custom_call.1}
  #allocation0 [shape = 'u32[]', space=smem, size = 0x4, offset = 0x4, fixed_abs, tag = 'smem constant byte address 0x4 - core index']
  #allocation1 [shape = 'u32[144,128]{1,0:T(1,128)}', space=vmem, size = 0x12000, scoped, tag = 'internal scratch']
  %s0 = inlined_call_operand.hbm [shape: f32[512,256], index: 0, kind: input, shape index: {}]
  %s1 = inlined_call_operand.hbm [shape: bf16[256,128], index: 1, kind: input, shape index: {}]
  %s2 = inlined_call_operand.hbm [shape: f32[1,128], index: 2, kind: input, shape index: {}]
  %s3 = inlined_call_operand.hbm [shape: bf16[128,128], index: 3, kind: input, shape index: {}]
  %s4 = inlined_call_operand.hbm [shape: f32[1,128], index: 4, kind: input, shape index: {}]
  %s5 = inlined_call_operand.hbm [shape: bf16[128,128], index: 5, kind: input, shape index: {}]
  %s6 = inlined_call_operand.hbm [shape: f32[1,128], index: 6, kind: input, shape index: {}]
  %s7 = inlined_call_operand.hbm [shape: bf16[128,256], index: 7, kind: input, shape index: {}]
  %s8 = inlined_call_operand.hbm [shape: f32[1,256], index: 8, kind: input, shape index: {}]
  %s9 = inlined_call_operand.hbm [shape: f32[512,128], index: 9, kind: output, shape index: {0}]
  %s10 = inlined_call_operand.hbm [shape: f32[512,128], index: 10, kind: output, shape index: {1}]
  %11 = xla_tuple %s9, %s10
  %s12 = sld [smem:[#allocation0]]
  $region113: #{tpu_custom_call.1} parent=0
    _
  %s14 = ssub.s32 1, %s12
  %s15 = scalar_select 0, %s14, %s12
  $region1: #{tpu_custom_call.1} parent=0
    #allocation2 [shape = 'u8[524288]{0}', space=vmem, size = 0x80000, scoped, tag = 'input window, operand 0']
    #allocation3 [shape = 's32[2]{0}', space=sflag, size = 0x8, scoped, tag = 'scoped memory for tpu_custom_call.1']
    #allocation4 [shape = 's32[2]{0}', space=sflag, size = 0x8, scoped, tag = 'scoped memory for tpu_custom_call.1']
    #allocation5 [shape = 'u8[65536]{0}', space=vmem, size = 0x10000, scoped, tag = 'input window, operand 1, single buffered']
    #allocation6 [shape = 's32[1]{0}', space=sflag, size = 0x4, scoped, tag = 'scoped memory for tpu_custom_call.1']
    #allocation7 [shape = 'u8[512]{0}', space=vmem, size = 0x400, scoped, tag = 'input window, operand 2, single buffered']
    #allocation8 [shape = 'u8[32768]{0}', space=vmem, size = 0x8000, scoped, tag = 'input window, operand 3, single buffered']
    #allocation9 [shape = 's32[1]{0}', space=sflag, size = 0x4, scoped, tag = 'scoped memory for tpu_custom_call.1']
    #allocation10 [shape = 'u8[512]{0}', space=vmem, size = 0x400, scoped, tag = 'input window, operand 4, single buffered']
    #allocation11 [shape = 'u8[32768]{0}', space=vmem, size = 0x8000, scoped, tag = 'input window, operand 5, single buffered']
    #allocation12 [shape = 's32[1]{0}', space=sflag, size = 0x4, scoped, tag = 'scoped memory for tpu_custom_call.1']
    #allocation13 [shape = 'u8[512]{0}', space=vmem, size = 0x400, scoped, tag = 'input window, operand 6, single buffered']
    #allocation14 [shape = 'u8[65536]{0}', space=vmem, size = 0x10000, scoped, tag = 'input window, operand 7, single buffered']
    #allocation15 [shape = 's32[1]{0}', space=sflag, size = 0x4, scoped, tag = 'scoped memory for tpu_custom_call.1']
    #allocation16 [shape = 'u8[1024]{0}', space=vmem, size = 0x400, scoped, tag = 'input window, operand 8, single buffered']
    #allocation17 [shape = 'u8[262144]{0}', space=vmem, size = 0x40000, scoped, tag = 'output window, operand 0']
    #allocation18 [shape = 'u8[262144]{0}', space=vmem, size = 0x40000, scoped, tag = 'output window, operand 1']
    #allocation19 [shape = 's32[2]{0}', space=sflag, size = 0x8, scoped, tag = 'scoped memory for tpu_custom_call.1']
    %16 = vsyncpa [#allocation3], 0
    %s17 = scalar_lea.sflag [#allocation3], 1
    %18 = vsyncpa %s17, 0
    %19 = vsyncpa [#allocation6], 0
    %20 = vsyncpa [#allocation9], 0
    %21 = vsyncpa [#allocation12], 0
    %22 = vsyncpa [#allocation15], 0
    %23 = vsyncpa [#allocation4], 0
    %s24 = scalar_lea.sflag [#allocation4], 1
    %25 = vsyncpa %s24, 0
    %26 = vsyncpa [#allocation19], 0
    %s27 = scalar_lea.sflag [#allocation19], 1
    %28 = vsyncpa %s27, 0
    loop: start=0, step=1, limit=4
    $region2: #{tpu_custom_call.1} parent=1 // loop_pre_header
      _
    $region3: #{tpu_custom_call.1} parent=1 // loop_header
      %s30 = sphi 0, %s34
      %p31 = scmp.ge.s32.totalorder %s30, 4
      %s40 = sphi 0, %s42
      %s43 = sphi 0, %s40
      %s44 = sphi 0, %s43
      %s60 = sphi 0, %s44
      %s64 = sphi 0, %s64
      %s66 = sphi 0, %s64
      %s67 = sphi 0, %s66
      %s81 = sphi 0, %s67
      %s85 = sphi 0, %s85
      %s87 = sphi 0, %s85
      %s88 = sphi 0, %s87
      %s102 = sphi 0, %s88
      %s106 = sphi 0, %s106
      %s108 = sphi 0, %s106
      %s109 = sphi 0, %s108
      %s123 = sphi 0, %s109
      %s127 = sphi 0, %s127
      %s129 = sphi 0, %s127
      %s130 = sphi 0, %s129
      %s144 = sphi 0, %s130
      %s148 = sphi 0, %s148
      %s150 = sphi 0, %s148
      %s151 = sphi 0, %s150
      %s165 = sphi 0, %s151
      %s169 = sphi 0, %s169
      %s171 = sphi 0, %s169
      %s172 = sphi 0, %s171
      %s186 = sphi 0, %s172
      %s190 = sphi 0, %s190
      %s192 = sphi 0, %s190
      %s193 = sphi 0, %s192
      %s207 = sphi 0, %s193
      %s211 = sphi 0, %s211
      %s213 = sphi 0, %s211
      %s214 = sphi 0, %s213
      %s228 = sphi 0, %s214
      %s234 = sphi 0, %s236
      %s237 = sphi 0, %s234
      %s238 = sphi 0, %s237
      %s254 = sphi 0, %s238
      %s260 = sphi 0, %s262
      %s263 = sphi 0, %s260
      %s264 = sphi 0, %s263
      %s280 = sphi 0, %s264
    $region4: #{tpu_custom_call.1} parent=1 // loop_header_branch
      %33 = sbr.rel (%p31) target = $region8
    $region5: #{tpu_custom_call.1} parent=1 // loop_body
      %s35 = ssub.s32 %s30, 1
      %s36 = ssub.s32 %s30, 2
      %s37 = sadd.s32 %s30, 1
      %s38 = ssub.s32 %s30, %s37
      %p39 = scmp.eq.s32.totalorder %s38, 0
      %s41 = sadd.s32 %s40, 1
      %s42 = scalar_select %p39, %s40, %s41
      %p45 = pneg %p39
      %p46 = scmp.eq.s32.totalorder %s30, 1
      %p47 = por %p45, %p46
      %p48 = scmp.ne.s32.totalorder %s40, %s43
      %p49 = scmp.eq.s32.totalorder %s30, 0
      %p50 = por %p48, %p49
      %p51 = scmp.ne.s32.totalorder %s40, %s43
      %p52 = scmp.eq.s32.totalorder %s35, 1
      %p53 = por %p51, %p52
      %p54 = scmp.ne.s32.totalorder %s43, %s44
      %p55 = scmp.eq.s32.totalorder %s35, 0
      %p56 = por %p54, %p55
      %p57 = scmp.ne.s32.totalorder %s43, %s44
      %p58 = scmp.eq.s32.totalorder %s36, 1
      %p59 = por %p57, %p58
      %p61 = scmp.ne.s32.totalorder %s44, %s60
      %p62 = scmp.eq.s32.totalorder %s36, 0
      %p63 = por %p61, %p62
      %s65 = sadd.s32 %s64, 1
      %p68 = scmp.eq.s32.totalorder %s30, 1
      %p69 = scmp.ne.s32.totalorder %s64, %s66
      %p70 = scmp.eq.s32.totalorder %s30, 0
      %p71 = por %p69, %p70
      %p72 = scmp.ne.s32.totalorder %s64, %s66
      %p73 = scmp.eq.s32.totalorder %s35, 1
      %p74 = por %p72, %p73
      %p75 = scmp.ne.s32.totalorder %s66, %s67
      %p76 = scmp.eq.s32.totalorder %s35, 0
      %p77 = por %p75, %p76
      %p78 = scmp.ne.s32.totalorder %s66, %s67
      %p79 = scmp.eq.s32.totalorder %s36, 1
      %p80 = por %p78, %p79
      %p82 = scmp.ne.s32.totalorder %s67, %s81
      %p83 = scmp.eq.s32.totalorder %s36, 0
      %p84 = por %p82, %p83
      %s86 = sadd.s32 %s85, 1
      %p89 = scmp.eq.s32.totalorder %s30, 1
      %p90 = scmp.ne.s32.totalorder %s85, %s87
      %p91 = scmp.eq.s32.totalorder %s30, 0
      %p92 = por %p90, %p91
      %p93 = scmp.ne.s32.totalorder %s85, %s87
      %p94 = scmp.eq.s32.totalorder %s35, 1
      %p95 = por %p93, %p94
      %p96 = scmp.ne.s32.totalorder %s87, %s88
      %p97 = scmp.eq.s32.totalorder %s35, 0
      %p98 = por %p96, %p97
      %p99 = scmp.ne.s32.totalorder %s87, %s88
      %p100 = scmp.eq.s32.totalorder %s36, 1
      %p101 = por %p99, %p100
      %p103 = scmp.ne.s32.totalorder %s88, %s102
      %p104 = scmp.eq.s32.totalorder %s36, 0
      %p105 = por %p103, %p104
      %s107 = sadd.s32 %s106, 1
      %p110 = scmp.eq.s32.totalorder %s30, 1
      %p111 = scmp.ne.s32.totalorder %s106, %s108
      %p112 = scmp.eq.s32.totalorder %s30, 0
      %p113 = por %p111, %p112
      %p114 = scmp.ne.s32.totalorder %s106, %s108
      %p115 = scmp.eq.s32.totalorder %s35, 1
      %p116 = por %p114, %p115
      %p117 = scmp.ne.s32.totalorder %s108, %s109
      %p118 = scmp.eq.s32.totalorder %s35, 0
      %p119 = por %p117, %p118
      %p120 = scmp.ne.s32.totalorder %s108, %s109
      %p121 = scmp.eq.s32.totalorder %s36, 1
      %p122 = por %p120, %p121
      %p124 = scmp.ne.s32.totalorder %s109, %s123
      %p125 = scmp.eq.s32.totalorder %s36, 0
      %p126 = por %p124, %p125
      %s128 = sadd.s32 %s127, 1
      %p131 = scmp.eq.s32.totalorder %s30, 1
      %p132 = scmp.ne.s32.totalorder %s127, %s129
      %p133 = scmp.eq.s32.totalorder %s30, 0
      %p134 = por %p132, %p133
      %p135 = scmp.ne.s32.totalorder %s127, %s129
      %p136 = scmp.eq.s32.totalorder %s35, 1
      %p137 = por %p135, %p136
      %p138 = scmp.ne.s32.totalorder %s129, %s130
      %p139 = scmp.eq.s32.totalorder %s35, 0
      %p140 = por %p138, %p139
      %p141 = scmp.ne.s32.totalorder %s129, %s130
      %p142 = scmp.eq.s32.totalorder %s36, 1
      %p143 = por %p141, %p142
      %p145 = scmp.ne.s32.totalorder %s130, %s144
      %p146 = scmp.eq.s32.totalorder %s36, 0
      %p147 = por %p145, %p146
      %s149 = sadd.s32 %s148, 1
      %p152 = scmp.eq.s32.totalorder %s30, 1
      %p153 = scmp.ne.s32.totalorder %s148, %s150
      %p154 = scmp.eq.s32.totalorder %s30, 0
      %p155 = por %p153, %p154
      %p156 = scmp.ne.s32.totalorder %s148, %s150
      %p157 = scmp.eq.s32.totalorder %s35, 1
      %p158 = por %p156, %p157
      %p159 = scmp.ne.s32.totalorder %s150, %s151
      %p160 = scmp.eq.s32.totalorder %s35, 0
      %p161 = por %p159, %p160
      %p162 = scmp.ne.s32.totalorder %s150, %s151
      %p163 = scmp.eq.s32.totalorder %s36, 1
      %p164 = por %p162, %p163
      %p166 = scmp.ne.s32.totalorder %s151, %s165
      %p167 = scmp.eq.s32.totalorder %s36, 0
      %p168 = por %p166, %p167
      %s170 = sadd.s32 %s169, 1
      %p173 = scmp.eq.s32.totalorder %s30, 1
      %p174 = scmp.ne.s32.totalorder %s169, %s171
      %p175 = scmp.eq.s32.totalorder %s30, 0
      %p176 = por %p174, %p175
      %p177 = scmp.ne.s32.totalorder %s169, %s171
      %p178 = scmp.eq.s32.totalorder %s35, 1
      %p179 = por %p177, %p178
      %p180 = scmp.ne.s32.totalorder %s171, %s172
      %p181 = scmp.eq.s32.totalorder %s35, 0
      %p182 = por %p180, %p181
      %p183 = scmp.ne.s32.totalorder %s171, %s172
      %p184 = scmp.eq.s32.totalorder %s36, 1
      %p185 = por %p183, %p184
      %p187 = scmp.ne.s32.totalorder %s172, %s186
      %p188 = scmp.eq.s32.totalorder %s36, 0
      %p189 = por %p187, %p188
      %s191 = sadd.s32 %s190, 1
      %p194 = scmp.eq.s32.totalorder %s30, 1
      %p195 = scmp.ne.s32.totalorder %s190, %s192
      %p196 = scmp.eq.s32.totalorder %s30, 0
      %p197 = por %p195, %p196
      %p198 = scmp.ne.s32.totalorder %s190, %s192
      %p199 = scmp.eq.s32.totalorder %s35, 1
      %p200 = por %p198, %p199
      %p201 = scmp.ne.s32.totalorder %s192, %s193
      %p202 = scmp.eq.s32.totalorder %s35, 0
      %p203 = por %p201, %p202
      %p204 = scmp.ne.s32.totalorder %s192, %s193
      %p205 = scmp.eq.s32.totalorder %s36, 1
      %p206 = por %p204, %p205
      %p208 = scmp.ne.s32.totalorder %s193, %s207
      %p209 = scmp.eq.s32.totalorder %s36, 0
      %p210 = por %p208, %p209
      %s212 = sadd.s32 %s211, 1
      %p215 = scmp.eq.s32.totalorder %s30, 1
      %p216 = scmp.ne.s32.totalorder %s211, %s213
      %p217 = scmp.eq.s32.totalorder %s30, 0
      %p218 = por %p216, %p217
      %p219 = scmp.ne.s32.totalorder %s211, %s213
      %p220 = scmp.eq.s32.totalorder %s35, 1
      %p221 = por %p219, %p220
      %p222 = scmp.ne.s32.totalorder %s213, %s214
      %p223 = scmp.eq.s32.totalorder %s35, 0
      %p224 = por %p222, %p223
      %p225 = scmp.ne.s32.totalorder %s213, %s214
      %p226 = scmp.eq.s32.totalorder %s36, 1
      %p227 = por %p225, %p226
      %p229 = scmp.ne.s32.totalorder %s214, %s228
      %p230 = scmp.eq.s32.totalorder %s36, 0
      %p231 = por %p229, %p230
      %s232 = ssub.s32 %s30, %s37
      %p233 = scmp.eq.s32.totalorder %s232, 0
      %s235 = sadd.s32 %s234, 1
      %s236 = scalar_select %p233, %s234, %s235
      %p239 = pneg %p233
      %p240 = scmp.eq.s32.totalorder %s30, 1
      %p241 = por %p239, %p240
      %p242 = scmp.ne.s32.totalorder %s234, %s237
      %p243 = scmp.eq.s32.totalorder %s30, 0
      %p244 = por %p242, %p243
      %p245 = scmp.ne.s32.totalorder %s234, %s237
      %p246 = scmp.eq.s32.totalorder %s35, 1
      %p247 = por %p245, %p246
      %p248 = scmp.ne.s32.totalorder %s237, %s238
      %p249 = scmp.eq.s32.totalorder %s35, 0
      %p250 = por %p248, %p249
      %p251 = scmp.ne.s32.totalorder %s237, %s238
      %p252 = scmp.eq.s32.totalorder %s36, 1
      %p253 = por %p251, %p252
      %p255 = scmp.ne.s32.totalorder %s238, %s254
      %p256 = scmp.eq.s32.totalorder %s36, 0
      %p257 = por %p255, %p256
      %s258 = ssub.s32 %s30, %s37
      %p259 = scmp.eq.s32.totalorder %s258, 0
      %s261 = sadd.s32 %s260, 1
      %s262 = scalar_select %p259, %s260, %s261
      %p265 = pneg %p259
      %p266 = scmp.eq.s32.totalorder %s30, 1
      %p267 = por %p265, %p266
      %p268 = scmp.ne.s32.totalorder %s260, %s263
      %p269 = scmp.eq.s32.totalorder %s30, 0
      %p270 = por %p268, %p269
      %p271 = scmp.ne.s32.totalorder %s260, %s263
      %p272 = scmp.eq.s32.totalorder %s35, 1
      %p273 = por %p271, %p272
      %p274 = scmp.ne.s32.totalorder %s263, %s264
      %p275 = scmp.eq.s32.totalorder %s35, 0
      %p276 = por %p274, %p275
      %p277 = scmp.ne.s32.totalorder %s263, %s264
      %p278 = scmp.eq.s32.totalorder %s36, 1
      %p279 = por %p277, %p278
      %p281 = scmp.ne.s32.totalorder %s264, %s280
      %p282 = scmp.eq.s32.totalorder %s36, 0
      %p283 = por %p281, %p282
      %p284 = scmp.le.s32.totalorder 1, %s30
      %p285 = scmp.lt.s32.totalorder %s30, 3
      %p286 = pnand %p284, %p285
      %p287 = pneg %p286
      // Predicated region
      $region9: #{tpu_custom_call.1} parent=5 // pred_check
        _
      $region10: #{tpu_custom_call.1} parent=5 // pred_check_branch
        %289 = sbr.rel (%p286) target = $region12
      $region11: #{tpu_custom_call.1} parent=5 // pred_region
        %s290 = ssub.s32 %s30, 1
        // Predicated region
        $region13: #{tpu_custom_call.1} parent=11 // pred_check
          %p291 = pneg %p77
        $region14: #{tpu_custom_call.1} parent=11 // pred_check_branch
          %293 = sbr.rel (%p291) target = $region16
        $region15: #{tpu_custom_call.1} parent=11 // pred_region
          %s295 = ssub.s32 2048, 2048
          %296 = vsyncadd [#allocation6], %s295
          %s297 = sshll.u32 [#allocation5], 4
          %s298 = int_to_ptr.vmem [resolvable:$true] %s297
          %303 = dma.hbm_to_vmem [thread:$0]  %s1, 2048, %s298, [#allocation6], 64, 64, 4
        $region16: #{tpu_custom_call.1} parent=11 // pred_fallthru
          _
        // Predicated region
        $region17: #{tpu_custom_call.1} parent=11 // pred_check
          %p304 = pneg %p98
        $region18: #{tpu_custom_call.1} parent=11 // pred_check_branch
          %306 = sbr.rel (%p304) target = $region20
        $region19: #{tpu_custom_call.1} parent=11 // pred_region
          %s308 = ssub.s32 16, 16
          %309 = vsyncadd [#allocation6], %s308
          %s311 = sshll.u32 [#allocation7], 4
          %s312 = int_to_ptr.vmem [resolvable:$true] %s311
          %314 = dma.hbm_to_vmem [thread:$0]  %s2, 16, %s312, [#allocation6]
        $region20: #{tpu_custom_call.1} parent=11 // pred_fallthru
          _
        // Predicated region
        $region21: #{tpu_custom_call.1} parent=11 // pred_check
          %p315 = pneg %p119
        $region22: #{tpu_custom_call.1} parent=11 // pred_check_branch
          %317 = sbr.rel (%p315) target = $region24
        $region23: #{tpu_custom_call.1} parent=11 // pred_region
          %s319 = ssub.s32 1024, 1024
          %320 = vsyncadd [#allocation9], %s319
          %s321 = sshll.u32 [#allocation8], 4
          %s322 = int_to_ptr.vmem [resolvable:$true] %s321
          %327 = dma.hbm_to_vmem [thread:$0]  %s3, 1024, %s322, [#allocation9], 64, 64, 4
        $region24: #{tpu_custom_call.1} parent=11 // pred_fallthru
          _
        // Predicated region
        $region25: #{tpu_custom_call.1} parent=11 // pred_check
          %p328 = pneg %p140
        $region26: #{tpu_custom_call.1} parent=11 // pred_check_branch
          %330 = sbr.rel (%p328) target = $region28
        $region27: #{tpu_custom_call.1} parent=11 // pred_region
          %s332 = ssub.s32 16, 16
          %333 = vsyncadd [#allocation9], %s332
          %s335 = sshll.u32 [#allocation10], 4
          %s336 = int_to_ptr.vmem [resolvable:$true] %s335
          %338 = dma.hbm_to_vmem [thread:$0]  %s4, 16, %s336, [#allocation9]
        $region28: #{tpu_custom_call.1} parent=11 // pred_fallthru
          _
        // Predicated region
        $region29: #{tpu_custom_call.1} parent=11 // pred_check
          %p339 = pneg %p161
        $region30: #{tpu_custom_call.1} parent=11 // pred_check_branch
          %341 = sbr.rel (%p339) target = $region32
        $region31: #{tpu_custom_call.1} parent=11 // pred_region
          %s343 = ssub.s32 1024, 1024
          %344 = vsyncadd [#allocation12], %s343
          %s345 = sshll.u32 [#allocation11], 4
          %s346 = int_to_ptr.vmem [resolvable:$true] %s345
          %351 = dma.hbm_to_vmem [thread:$0]  %s5, 1024, %s346, [#allocation12], 64, 64, 4
        $region32: #{tpu_custom_call.1} parent=11 // pred_fallthru
          _
        // Predicated region
        $region33: #{tpu_custom_call.1} parent=11 // pred_check
          %p352 = pneg %p182
        $region34: #{tpu_custom_call.1} parent=11 // pred_check_branch
          %354 = sbr.rel (%p352) target = $region36
        $region35: #{tpu_custom_call.1} parent=11 // pred_region
          %s356 = ssub.s32 16, 16
          %357 = vsyncadd [#allocation12], %s356
          %s359 = sshll.u32 [#allocation13], 4
          %s360 = int_to_ptr.vmem [resolvable:$true] %s359
          %362 = dma.hbm_to_vmem [thread:$0]  %s6, 16, %s360, [#allocation12]
        $region36: #{tpu_custom_call.1} parent=11 // pred_fallthru
          _
        // Predicated region
        $region37: #{tpu_custom_call.1} parent=11 // pred_check
          %p363 = pneg %p203
        $region38: #{tpu_custom_call.1} parent=11 // pred_check_branch
          %365 = sbr.rel (%p363) target = $region40
        $region39: #{tpu_custom_call.1} parent=11 // pred_region
          %s367 = ssub.s32 2048, 2048
          %368 = vsyncadd [#allocation15], %s367
          %s369 = sshll.u32 [#allocation14], 4
          %s370 = int_to_ptr.vmem [resolvable:$true] %s369
          %375 = dma.hbm_to_vmem [thread:$0]  %s7, 2048, %s370, [#allocation15], 128, 128, 8
        $region40: #{tpu_custom_call.1} parent=11 // pred_fallthru
          _
        // Predicated region
        $region41: #{tpu_custom_call.1} parent=11 // pred_check
          %p376 = pneg %p224
        $region42: #{tpu_custom_call.1} parent=11 // pred_check_branch
          %378 = sbr.rel (%p376) target = $region44
        $region43: #{tpu_custom_call.1} parent=11 // pred_region
          %s380 = ssub.s32 32, 32
          %381 = vsyncadd [#allocation15], %s380
          %s383 = sshll.u32 [#allocation16], 4
          %s384 = int_to_ptr.vmem [resolvable:$true] %s383
          %386 = dma.hbm_to_vmem [thread:$0]  %s8, 32, %s384, [#allocation15]
        $region44: #{tpu_custom_call.1} parent=11 // pred_fallthru
          _
      $region12: #{tpu_custom_call.1} parent=5 // pred_fallthru
        _
      %p387 = scmp.lt.s32.totalorder %s30, 2
      // Predicated region
      $region45: #{tpu_custom_call.1} parent=5 // pred_check
        %p388 = pneg %p387
      $region46: #{tpu_custom_call.1} parent=5 // pred_check_branch
        %390 = sbr.rel (%p388) target = $region48
      $region47: #{tpu_custom_call.1} parent=5 // pred_region
        // Predicated region
        $region49: #{tpu_custom_call.1} parent=47 // pred_check
          %p391 = pneg %p50
        $region50: #{tpu_custom_call.1} parent=47 // pred_check_branch
          %393 = sbr.rel (%p391) target = $region52
        $region51: #{tpu_custom_call.1} parent=47 // pred_region
          %s394 = sand.u32 %s40, 1
          %s395 = scalar_lea.sflag [#allocation3], %s394
          %s396 = sand.u32 %s40, 1
          %s397 = smul.addr %s396, 512
          %s398 = scalar_lea.vmem [#allocation2], %s397
          %s399 = smul.u32 32, %s30
          %s401 = ssub.s32 8192, 8192
          %402 = vsyncadd %s395, %s401
          %s403 = smul.addr %s399, 2
          %s404 = smul.addr %s403, 128
          %s405 = scalar_lea.hbm %s0, %s404
          %s406 = sshll.u32 %s398, 4
          %s407 = int_to_ptr.vmem [resolvable:$true] %s406
          %412 = dma.hbm_to_vmem [thread:$0]  %s405, 8192, %s407, %s395, 256, 256, 16
        $region52: #{tpu_custom_call.1} parent=47 // pred_fallthru
          _
      $region48: #{tpu_custom_call.1} parent=5 // pred_fallthru
        _
      %p413 = scmp.le.s32.totalorder 1, %s30
      %p414 = scmp.lt.s32.totalorder %s30, 3
      %p415 = pnand %p413, %p414
      %p416 = pneg %p415
      // Predicated region
      $region53: #{tpu_custom_call.1} parent=5 // pred_check
        _
      $region54: #{tpu_custom_call.1} parent=5 // pred_check_branch
        %418 = sbr.rel (%p415) target = $region56
      $region55: #{tpu_custom_call.1} parent=5 // pred_region
        %s419 = ssub.s32 %s30, 1
        %s420 = sand.u32 %s43, 1
        %s421 = scalar_lea.sflag [#allocation3], %s420
        %s422 = sand.u32 %s43, 1
        %s423 = smul.addr %s422, 512
        %s424 = scalar_lea.vmem [#allocation2], %s423
        // Predicated region
        $region57: #{tpu_custom_call.1} parent=55 // pred_check
          %p425 = pneg %p56
        $region58: #{tpu_custom_call.1} parent=55 // pred_check_branch
          %427 = sbr.rel (%p425) target = $region60
        $region59: #{tpu_custom_call.1} parent=55 // pred_region
          %428 = dma.done %s421, 8192
        $region60: #{tpu_custom_call.1} parent=55 // pred_fallthru
          _
        // Predicated region
        $region61: #{tpu_custom_call.1} parent=55 // pred_check
          %p429 = pneg %p77
        $region62: #{tpu_custom_call.1} parent=55 // pred_check_branch
          %431 = sbr.rel (%p429) target = $region64
        $region63: #{tpu_custom_call.1} parent=55 // pred_region
          %432 = dma.done [#allocation6], 2048
        $region64: #{tpu_custom_call.1} parent=55 // pred_fallthru
          _
        // Predicated region
        $region65: #{tpu_custom_call.1} parent=55 // pred_check
          %p433 = pneg %p98
        $region66: #{tpu_custom_call.1} parent=55 // pred_check_branch
          %435 = sbr.rel (%p433) target = $region68
        $region67: #{tpu_custom_call.1} parent=55 // pred_region
          %436 = dma.done [#allocation6], 16
        $region68: #{tpu_custom_call.1} parent=55 // pred_fallthru
          _
        // Predicated region
        $region69: #{tpu_custom_call.1} parent=55 // pred_check
          %p437 = pneg %p119
        $region70: #{tpu_custom_call.1} parent=55 // pred_check_branch
          %439 = sbr.rel (%p437) target = $region72
        $region71: #{tpu_custom_call.1} parent=55 // pred_region
          %440 = dma.done [#allocation9], 1024
        $region72: #{tpu_custom_call.1} parent=55 // pred_fallthru
          _
        // Predicated region
        $region73: #{tpu_custom_call.1} parent=55 // pred_check
          %p441 = pneg %p140
        $region74: #{tpu_custom_call.1} parent=55 // pred_check_branch
          %443 = sbr.rel (%p441) target = $region76
        $region75: #{tpu_custom_call.1} parent=55 // pred_region
          %444 = dma.done [#allocation9], 16
        $region76: #{tpu_custom_call.1} parent=55 // pred_fallthru
          _
        // Predicated region
        $region77: #{tpu_custom_call.1} parent=55 // pred_check
          %p445 = pneg %p161
        $region78: #{tpu_custom_call.1} parent=55 // pred_check_branch
          %447 = sbr.rel (%p445) target = $region80
        $region79: #{tpu_custom_call.1} parent=55 // pred_region
          %448 = dma.done [#allocation12], 1024
        $region80: #{tpu_custom_call.1} parent=55 // pred_fallthru
          _
        // Predicated region
        $region81: #{tpu_custom_call.1} parent=55 // pred_check
          %p449 = pneg %p182
        $region82: #{tpu_custom_call.1} parent=55 // pred_check_branch
          %451 = sbr.rel (%p449) target = $region84
        $region83: #{tpu_custom_call.1} parent=55 // pred_region
          %452 = dma.done [#allocation12], 16
        $region84: #{tpu_custom_call.1} parent=55 // pred_fallthru
          _
        // Predicated region
        $region85: #{tpu_custom_call.1} parent=55 // pred_check
          %p453 = pneg %p203
        $region86: #{tpu_custom_call.1} parent=55 // pred_check_branch
          %455 = sbr.rel (%p453) target = $region88
        $region87: #{tpu_custom_call.1} parent=55 // pred_region
          %456 = dma.done [#allocation15], 2048
        $region88: #{tpu_custom_call.1} parent=55 // pred_fallthru
          _
        // Predicated region
        $region89: #{tpu_custom_call.1} parent=55 // pred_check
          %p457 = pneg %p224
        $region90: #{tpu_custom_call.1} parent=55 // pred_check_branch
          %459 = sbr.rel (%p457) target = $region92
        $region91: #{tpu_custom_call.1} parent=55 // pred_region
          %460 = dma.done [#allocation15], 32
        $region92: #{tpu_custom_call.1} parent=55 // pred_fallthru
          _
        %s461 = sand.u32 %s43, 1
        %s462 = scalar_lea.sflag [#allocation3], %s461
        %s463 = sand.u32 %s43, 1
        %s464 = smul.addr %s463, 512
        %s465 = scalar_lea.vmem [#allocation2], %s464
        %p466 = pneg %p56
        %p467 = pneg %p53
        %p468 = pneg %p77
        %p469 = pneg %p74
        %p470 = pneg %p98
        %p471 = pneg %p95
        %p472 = pneg %p119
        %p473 = pneg %p116
        %p474 = pneg %p140
        %p475 = pneg %p137
        %p476 = pneg %p161
        %p477 = pneg %p158
        %p478 = pneg %p182
        %p479 = pneg %p179
        %p480 = pneg %p203
        %p481 = pneg %p200
        %p482 = pneg %p224
        %p483 = pneg %p221
        %p484 = pneg %p250
        %p485 = pneg %p247
        %s486 = sand.u32 %s237, 1
        %s487 = scalar_lea.sflag [#allocation4], %s486
        %s488 = sand.u32 %s237, 1
        %s489 = smul.addr %s488, 256
        %s490 = scalar_lea.vmem [#allocation17], %s489
        %p491 = pneg %p276
        %p492 = pneg %p273
        %s493 = sand.u32 %s263, 1
        %s494 = scalar_lea.sflag [#allocation19], %s493
        %s495 = sand.u32 %s263, 1
        %s496 = smul.addr %s495, 256
        %s497 = scalar_lea.vmem [#allocation18], %s496
        %s498 = smul.u32 32, %s35
        %s499 = smul.u32 32, %s35
        %s500 = smul.u32 32, %s35
        %v502 = vld [vmem:[%s424] sm:$0xff]
        %v503 = vld [vmem:[%s424 + $0x8] sm:$0xff]
        %v504 = vld [vmem:[%s424 + $0x10] sm:$0xff]
        %v505 = vld [vmem:[%s424 + $0x18] sm:$0xff]
        %v506 = vld [vmem:[%s424 + $0x20] sm:$0xff]
        %v507 = vld [vmem:[%s424 + $0x28] sm:$0xff]
        %v508 = vld [vmem:[%s424 + $0x30] sm:$0xff]
        %v509 = vld [vmem:[%s424 + $0x38] sm:$0xff]
        %v510 = vld [vmem:[%s424 + $0x40] sm:$0xff]
        %v511 = vld [vmem:[%s424 + $0x48] sm:$0xff]
        %v512 = vld [vmem:[%s424 + $0x50] sm:$0xff]
        %v513 = vld [vmem:[%s424 + $0x58] sm:$0xff]
        %v514 = vld [vmem:[%s424 + $0x60] sm:$0xff]
        %v515 = vld [vmem:[%s424 + $0x68] sm:$0xff]
        %v516 = vld [vmem:[%s424 + $0x70] sm:$0xff]
        %v517 = vld [vmem:[%s424 + $0x78] sm:$0xff]
        %v518 = vld [vmem:[%s424 + $0x80] sm:$0xff]
        %v519 = vld [vmem:[%s424 + $0x88] sm:$0xff]
        %v520 = vld [vmem:[%s424 + $0x90] sm:$0xff]
        %v521 = vld [vmem:[%s424 + $0x98] sm:$0xff]
        %v522 = vld [vmem:[%s424 + $0xa0] sm:$0xff]
        %v523 = vld [vmem:[%s424 + $0xa8] sm:$0xff]
        %v524 = vld [vmem:[%s424 + $0xb0] sm:$0xff]
        %v525 = vld [vmem:[%s424 + $0xb8] sm:$0xff]
        %v526 = vld [vmem:[%s424 + $0xc0] sm:$0xff]
        %v527 = vld [vmem:[%s424 + $0xc8] sm:$0xff]
        %v528 = vld [vmem:[%s424 + $0xd0] sm:$0xff]
        %v529 = vld [vmem:[%s424 + $0xd8] sm:$0xff]
        %v530 = vld [vmem:[%s424 + $0xe0] sm:$0xff]
        %v531 = vld [vmem:[%s424 + $0xe8] sm:$0xff]
        %v532 = vld [vmem:[%s424 + $0xf0] sm:$0xff]
        %v533 = vld [vmem:[%s424 + $0xf8] sm:$0xff]
        %v534 = vld [vmem:[%s424 + $0x100] sm:$0xff]
        %v535 = vld [vmem:[%s424 + $0x108] sm:$0xff]
        %v536 = vld [vmem:[%s424 + $0x110] sm:$0xff]
        %v537 = vld [vmem:[%s424 + $0x118] sm:$0xff]
        %v538 = vld [vmem:[%s424 + $0x120] sm:$0xff]
        %v539 = vld [vmem:[%s424 + $0x128] sm:$0xff]
        %v540 = vld [vmem:[%s424 + $0x130] sm:$0xff]
        %v541 = vld [vmem:[%s424 + $0x138] sm:$0xff]
        %v542 = vld [vmem:[%s424 + $0x140] sm:$0xff]
        %v543 = vld [vmem:[%s424 + $0x148] sm:$0xff]
        %v544 = vld [vmem:[%s424 + $0x150] sm:$0xff]
        %v545 = vld [vmem:[%s424 + $0x158] sm:$0xff]
        %v546 = vld [vmem:[%s424 + $0x160] sm:$0xff]
        %v547 = vld [vmem:[%s424 + $0x168] sm:$0xff]
        %v548 = vld [vmem:[%s424 + $0x170] sm:$0xff]
        %v549 = vld [vmem:[%s424 + $0x178] sm:$0xff]
        %v550 = vld [vmem:[%s424 + $0x180] sm:$0xff]
        %v551 = vld [vmem:[%s424 + $0x188] sm:$0xff]
        %v552 = vld [vmem:[%s424 + $0x190] sm:$0xff]
        %v553 = vld [vmem:[%s424 + $0x198] sm:$0xff]
        %v554 = vld [vmem:[%s424 + $0x1a0] sm:$0xff]
        %v555 = vld [vmem:[%s424 + $0x1a8] sm:$0xff]
        %v556 = vld [vmem:[%s424 + $0x1b0] sm:$0xff]
        %v557 = vld [vmem:[%s424 + $0x1b8] sm:$0xff]
        %v558 = vld [vmem:[%s424 + $0x1c0] sm:$0xff]
        %v559 = vld [vmem:[%s424 + $0x1c8] sm:$0xff]
        %v560 = vld [vmem:[%s424 + $0x1d0] sm:$0xff]
        %v561 = vld [vmem:[%s424 + $0x1d8] sm:$0xff]
        %v562 = vld [vmem:[%s424 + $0x1e0] sm:$0xff]
        %v563 = vld [vmem:[%s424 + $0x1e8] sm:$0xff]
        %v564 = vld [vmem:[%s424 + $0x1f0] sm:$0xff]
        %v565 = vld [vmem:[%s424 + $0x1f8] sm:$0xff]
        %v566 = vadd.f32 %v502, 1.0
        %v567 = vlog2.pop %v566
        %v568 = vmul.f32 %v567, 0.6931472
        %v569 = vmul.f32 -0.5, %v502
        %v570 = vadd.f32 %v569, 1.0
        %v571 = vmul.f32 %v570, %v502
        %v572 = vand.u32 2147483647, %v502
        %vm573 = vcmp.lt.f32.partialorder %v572, 0.0004427343
        %v574 = vsel %vm573, %v571, %v568
        %v575 = vadd.f32 %v503, 1.0
        %v576 = vlog2.pop %v575
        %v577 = vmul.f32 %v576, 0.6931472
        %v578 = vmul.f32 -0.5, %v503
        %v579 = vadd.f32 %v578, 1.0
        %v580 = vmul.f32 %v579, %v503
        %v581 = vand.u32 2147483647, %v503
        %vm582 = vcmp.lt.f32.partialorder %v581, 0.0004427343
        %v583 = vsel %vm582, %v580, %v577
        %v584 = vadd.f32 %v504, 1.0
        %v585 = vlog2.pop %v584
        %v586 = vmul.f32 %v585, 0.6931472
        %v587 = vmul.f32 -0.5, %v504
        %v588 = vadd.f32 %v587, 1.0
        %v589 = vmul.f32 %v588, %v504
        %v590 = vand.u32 2147483647, %v504
        %vm591 = vcmp.lt.f32.partialorder %v590, 0.0004427343
        %v592 = vsel %vm591, %v589, %v586
        %v593 = vadd.f32 %v505, 1.0
        %v594 = vlog2.pop %v593
        %v595 = vmul.f32 %v594, 0.6931472
        %v596 = vmul.f32 -0.5, %v505
        %v597 = vadd.f32 %v596, 1.0
        %v598 = vmul.f32 %v597, %v505
        %v599 = vand.u32 2147483647, %v505
        %vm600 = vcmp.lt.f32.partialorder %v599, 0.0004427343
        %v601 = vsel %vm600, %v598, %v595
        %v602 = vadd.f32 %v506, 1.0
        %v603 = vlog2.pop %v602
        %v604 = vmul.f32 %v603, 0.6931472
        %v605 = vmul.f32 -0.5, %v506
        %v606 = vadd.f32 %v605, 1.0
        %v607 = vmul.f32 %v606, %v506
        %v608 = vand.u32 2147483647, %v506
        %vm609 = vcmp.lt.f32.partialorder %v608, 0.0004427343
        %v610 = vsel %vm609, %v607, %v604
        %v611 = vadd.f32 %v507, 1.0
        %v612 = vlog2.pop %v611
        %v613 = vmul.f32 %v612, 0.6931472
        %v614 = vmul.f32 -0.5, %v507
        %v615 = vadd.f32 %v614, 1.0
        %v616 = vmul.f32 %v615, %v507
        %v617 = vand.u32 2147483647, %v507
        %vm618 = vcmp.lt.f32.partialorder %v617, 0.0004427343
        %v619 = vsel %vm618, %v616, %v613
        %v620 = vadd.f32 %v508, 1.0
        %v621 = vlog2.pop %v620
        %v622 = vmul.f32 %v621, 0.6931472
        %v623 = vmul.f32 -0.5, %v508
        %v624 = vadd.f32 %v623, 1.0
        %v625 = vmul.f32 %v624, %v508
        %v626 = vand.u32 2147483647, %v508
        %vm627 = vcmp.lt.f32.partialorder %v626, 0.0004427343
        %v628 = vsel %vm627, %v625, %v622
        %v629 = vadd.f32 %v509, 1.0
        %v630 = vlog2.pop %v629
        %v631 = vmul.f32 %v630, 0.6931472
        %v632 = vmul.f32 -0.5, %v509
        %v633 = vadd.f32 %v632, 1.0
        %v634 = vmul.f32 %v633, %v509
        %v635 = vand.u32 2147483647, %v509
        %vm636 = vcmp.lt.f32.partialorder %v635, 0.0004427343
        %v637 = vsel %vm636, %v634, %v631
        %v638 = vadd.f32 %v510, 1.0
        %v639 = vlog2.pop %v638
        %v640 = vmul.f32 %v639, 0.6931472
        %v641 = vmul.f32 -0.5, %v510
        %v642 = vadd.f32 %v641, 1.0
        %v643 = vmul.f32 %v642, %v510
        %v644 = vand.u32 2147483647, %v510
        %vm645 = vcmp.lt.f32.partialorder %v644, 0.0004427343
        %v646 = vsel %vm645, %v643, %v640
        %v647 = vadd.f32 %v511, 1.0
        %v648 = vlog2.pop %v647
        %v649 = vmul.f32 %v648, 0.6931472
        %v650 = vmul.f32 -0.5, %v511
        %v651 = vadd.f32 %v650, 1.0
        %v652 = vmul.f32 %v651, %v511
        %v653 = vand.u32 2147483647, %v511
        %vm654 = vcmp.lt.f32.partialorder %v653, 0.0004427343
        %v655 = vsel %vm654, %v652, %v649
        %v656 = vadd.f32 %v512, 1.0
        %v657 = vlog2.pop %v656
        %v658 = vmul.f32 %v657, 0.6931472
        %v659 = vmul.f32 -0.5, %v512
        %v660 = vadd.f32 %v659, 1.0
        %v661 = vmul.f32 %v660, %v512
        %v662 = vand.u32 2147483647, %v512
        %vm663 = vcmp.lt.f32.partialorder %v662, 0.0004427343
        %v664 = vsel %vm663, %v661, %v658
        %v665 = vadd.f32 %v513, 1.0
        %v666 = vlog2.pop %v665
        %v667 = vmul.f32 %v666, 0.6931472
        %v668 = vmul.f32 -0.5, %v513
        %v669 = vadd.f32 %v668, 1.0
        %v670 = vmul.f32 %v669, %v513
        %v671 = vand.u32 2147483647, %v513
        %vm672 = vcmp.lt.f32.partialorder %v671, 0.0004427343
        %v673 = vsel %vm672, %v670, %v667
        %v674 = vadd.f32 %v514, 1.0
        %v675 = vlog2.pop %v674
        %v676 = vmul.f32 %v675, 0.6931472
        %v677 = vmul.f32 -0.5, %v514
        %v678 = vadd.f32 %v677, 1.0
        %v679 = vmul.f32 %v678, %v514
        %v680 = vand.u32 2147483647, %v514
        %vm681 = vcmp.lt.f32.partialorder %v680, 0.0004427343
        %v682 = vsel %vm681, %v679, %v676
        %v683 = vadd.f32 %v515, 1.0
        %v684 = vlog2.pop %v683
        %v685 = vmul.f32 %v684, 0.6931472
        %v686 = vmul.f32 -0.5, %v515
        %v687 = vadd.f32 %v686, 1.0
        %v688 = vmul.f32 %v687, %v515
        %v689 = vand.u32 2147483647, %v515
        %vm690 = vcmp.lt.f32.partialorder %v689, 0.0004427343
        %v691 = vsel %vm690, %v688, %v685
        %v692 = vadd.f32 %v516, 1.0
        %v693 = vlog2.pop %v692
        %v694 = vmul.f32 %v693, 0.6931472
        %v695 = vmul.f32 -0.5, %v516
        %v696 = vadd.f32 %v695, 1.0
        %v697 = vmul.f32 %v696, %v516
        %v698 = vand.u32 2147483647, %v516
        %vm699 = vcmp.lt.f32.partialorder %v698, 0.0004427343
        %v700 = vsel %vm699, %v697, %v694
        %v701 = vadd.f32 %v517, 1.0
        %v702 = vlog2.pop %v701
        %v703 = vmul.f32 %v702, 0.6931472
        %v704 = vmul.f32 -0.5, %v517
        %v705 = vadd.f32 %v704, 1.0
        %v706 = vmul.f32 %v705, %v517
        %v707 = vand.u32 2147483647, %v517
        %vm708 = vcmp.lt.f32.partialorder %v707, 0.0004427343
        %v709 = vsel %vm708, %v706, %v703
        %v710 = vadd.f32 %v518, 1.0
        %v711 = vlog2.pop %v710
        %v712 = vmul.f32 %v711, 0.6931472
        %v713 = vmul.f32 -0.5, %v518
        %v714 = vadd.f32 %v713, 1.0
        %v715 = vmul.f32 %v714, %v518
        %v716 = vand.u32 2147483647, %v518
        %vm717 = vcmp.lt.f32.partialorder %v716, 0.0004427343
        %v718 = vsel %vm717, %v715, %v712
        %v719 = vadd.f32 %v519, 1.0
        %v720 = vlog2.pop %v719
        %v721 = vmul.f32 %v720, 0.6931472
        %v722 = vmul.f32 -0.5, %v519
        %v723 = vadd.f32 %v722, 1.0
        %v724 = vmul.f32 %v723, %v519
        %v725 = vand.u32 2147483647, %v519
        %vm726 = vcmp.lt.f32.partialorder %v725, 0.0004427343
        %v727 = vsel %vm726, %v724, %v721
        %v728 = vadd.f32 %v520, 1.0
        %v729 = vlog2.pop %v728
        %v730 = vmul.f32 %v729, 0.6931472
        %v731 = vmul.f32 -0.5, %v520
        %v732 = vadd.f32 %v731, 1.0
        %v733 = vmul.f32 %v732, %v520
        %v734 = vand.u32 2147483647, %v520
        %vm735 = vcmp.lt.f32.partialorder %v734, 0.0004427343
        %v736 = vsel %vm735, %v733, %v730
        %v737 = vadd.f32 %v521, 1.0
        %v738 = vlog2.pop %v737
        %v739 = vmul.f32 %v738, 0.6931472
        %v740 = vmul.f32 -0.5, %v521
        %v741 = vadd.f32 %v740, 1.0
        %v742 = vmul.f32 %v741, %v521
        %v743 = vand.u32 2147483647, %v521
        %vm744 = vcmp.lt.f32.partialorder %v743, 0.0004427343
        %v745 = vsel %vm744, %v742, %v739
        %v746 = vadd.f32 %v522, 1.0
        %v747 = vlog2.pop %v746
        %v748 = vmul.f32 %v747, 0.6931472
        %v749 = vmul.f32 -0.5, %v522
        %v750 = vadd.f32 %v749, 1.0
        %v751 = vmul.f32 %v750, %v522
        %v752 = vand.u32 2147483647, %v522
        %vm753 = vcmp.lt.f32.partialorder %v752, 0.0004427343
        %v754 = vsel %vm753, %v751, %v748
        %v755 = vadd.f32 %v523, 1.0
        %v756 = vlog2.pop %v755
        %v757 = vmul.f32 %v756, 0.6931472
        %v758 = vmul.f32 -0.5, %v523
        %v759 = vadd.f32 %v758, 1.0
        %v760 = vmul.f32 %v759, %v523
        %v761 = vand.u32 2147483647, %v523
        %vm762 = vcmp.lt.f32.partialorder %v761, 0.0004427343
        %v763 = vsel %vm762, %v760, %v757
        %v764 = vadd.f32 %v524, 1.0
        %v765 = vlog2.pop %v764
        %v766 = vmul.f32 %v765, 0.6931472
        %v767 = vmul.f32 -0.5, %v524
        %v768 = vadd.f32 %v767, 1.0
        %v769 = vmul.f32 %v768, %v524
        %v770 = vand.u32 2147483647, %v524
        %vm771 = vcmp.lt.f32.partialorder %v770, 0.0004427343
        %v772 = vsel %vm771, %v769, %v766
        %v773 = vadd.f32 %v525, 1.0
        %v774 = vlog2.pop %v773
        %v775 = vmul.f32 %v774, 0.6931472
        %v776 = vmul.f32 -0.5, %v525
        %v777 = vadd.f32 %v776, 1.0
        %v778 = vmul.f32 %v777, %v525
        %v779 = vand.u32 2147483647, %v525
        %vm780 = vcmp.lt.f32.partialorder %v779, 0.0004427343
        %v781 = vsel %vm780, %v778, %v775
        %v782 = vadd.f32 %v526, 1.0
        %v783 = vlog2.pop %v782
        %v784 = vmul.f32 %v783, 0.6931472
        %v785 = vmul.f32 -0.5, %v526
        %v786 = vadd.f32 %v785, 1.0
        %v787 = vmul.f32 %v786, %v526
        %v788 = vand.u32 2147483647, %v526
        %vm789 = vcmp.lt.f32.partialorder %v788, 0.0004427343
        %v790 = vsel %vm789, %v787, %v784
        %v791 = vadd.f32 %v527, 1.0
        %v792 = vlog2.pop %v791
        %v793 = vmul.f32 %v792, 0.6931472
        %v794 = vmul.f32 -0.5, %v527
        %v795 = vadd.f32 %v794, 1.0
        %v796 = vmul.f32 %v795, %v527
        %v797 = vand.u32 2147483647, %v527
        %vm798 = vcmp.lt.f32.partialorder %v797, 0.0004427343
        %v799 = vsel %vm798, %v796, %v793
        %v800 = vadd.f32 %v528, 1.0
        %v801 = vlog2.pop %v800
        %v802 = vmul.f32 %v801, 0.6931472
        %v803 = vmul.f32 -0.5, %v528
        %v804 = vadd.f32 %v803, 1.0
        %v805 = vmul.f32 %v804, %v528
        %v806 = vand.u32 2147483647, %v528
        %vm807 = vcmp.lt.f32.partialorder %v806, 0.0004427343
        %v808 = vsel %vm807, %v805, %v802
        %v809 = vadd.f32 %v529, 1.0
        %v810 = vlog2.pop %v809
        %v811 = vmul.f32 %v810, 0.6931472
        %v812 = vmul.f32 -0.5, %v529
        %v813 = vadd.f32 %v812, 1.0
        %v814 = vmul.f32 %v813, %v529
        %v815 = vand.u32 2147483647, %v529
        %vm816 = vcmp.lt.f32.partialorder %v815, 0.0004427343
        %v817 = vsel %vm816, %v814, %v811
        %v818 = vadd.f32 %v530, 1.0
        %v819 = vlog2.pop %v818
        %v820 = vmul.f32 %v819, 0.6931472
        %v821 = vmul.f32 -0.5, %v530
        %v822 = vadd.f32 %v821, 1.0
        %v823 = vmul.f32 %v822, %v530
        %v824 = vand.u32 2147483647, %v530
        %vm825 = vcmp.lt.f32.partialorder %v824, 0.0004427343
        %v826 = vsel %vm825, %v823, %v820
        %v827 = vadd.f32 %v531, 1.0
        %v828 = vlog2.pop %v827
        %v829 = vmul.f32 %v828, 0.6931472
        %v830 = vmul.f32 -0.5, %v531
        %v831 = vadd.f32 %v830, 1.0
        %v832 = vmul.f32 %v831, %v531
        %v833 = vand.u32 2147483647, %v531
        %vm834 = vcmp.lt.f32.partialorder %v833, 0.0004427343
        %v835 = vsel %vm834, %v832, %v829
        %v836 = vadd.f32 %v532, 1.0
        %v837 = vlog2.pop %v836
        %v838 = vmul.f32 %v837, 0.6931472
        %v839 = vmul.f32 -0.5, %v532
        %v840 = vadd.f32 %v839, 1.0
        %v841 = vmul.f32 %v840, %v532
        %v842 = vand.u32 2147483647, %v532
        %vm843 = vcmp.lt.f32.partialorder %v842, 0.0004427343
        %v844 = vsel %vm843, %v841, %v838
        %v845 = vadd.f32 %v533, 1.0
        %v846 = vlog2.pop %v845
        %v847 = vmul.f32 %v846, 0.6931472
        %v848 = vmul.f32 -0.5, %v533
        %v849 = vadd.f32 %v848, 1.0
        %v850 = vmul.f32 %v849, %v533
        %v851 = vand.u32 2147483647, %v533
        %vm852 = vcmp.lt.f32.partialorder %v851, 0.0004427343
        %v853 = vsel %vm852, %v850, %v847
        %v854 = vadd.f32 %v534, 1.0
        %v855 = vlog2.pop %v854
        %v856 = vmul.f32 %v855, 0.6931472
        %v857 = vmul.f32 -0.5, %v534
        %v858 = vadd.f32 %v857, 1.0
        %v859 = vmul.f32 %v858, %v534
        %v860 = vand.u32 2147483647, %v534
        %vm861 = vcmp.lt.f32.partialorder %v860, 0.0004427343
        %v862 = vsel %vm861, %v859, %v856
        %v863 = vadd.f32 %v535, 1.0
        %v864 = vlog2.pop %v863
        %v865 = vmul.f32 %v864, 0.6931472
        %v866 = vmul.f32 -0.5, %v535
        %v867 = vadd.f32 %v866, 1.0
        %v868 = vmul.f32 %v867, %v535
        %v869 = vand.u32 2147483647, %v535
        %vm870 = vcmp.lt.f32.partialorder %v869, 0.0004427343
        %v871 = vsel %vm870, %v868, %v865
        %v872 = vadd.f32 %v536, 1.0
        %v873 = vlog2.pop %v872
        %v874 = vmul.f32 %v873, 0.6931472
        %v875 = vmul.f32 -0.5, %v536
        %v876 = vadd.f32 %v875, 1.0
        %v877 = vmul.f32 %v876, %v536
        %v878 = vand.u32 2147483647, %v536
        %vm879 = vcmp.lt.f32.partialorder %v878, 0.0004427343
        %v880 = vsel %vm879, %v877, %v874
        %v881 = vadd.f32 %v537, 1.0
        %v882 = vlog2.pop %v881
        %v883 = vmul.f32 %v882, 0.6931472
        %v884 = vmul.f32 -0.5, %v537
        %v885 = vadd.f32 %v884, 1.0
        %v886 = vmul.f32 %v885, %v537
        %v887 = vand.u32 2147483647, %v537
        %vm888 = vcmp.lt.f32.partialorder %v887, 0.0004427343
        %v889 = vsel %vm888, %v886, %v883
        %v890 = vadd.f32 %v538, 1.0
        %v891 = vlog2.pop %v890
        %v892 = vmul.f32 %v891, 0.6931472
        %v893 = vmul.f32 -0.5, %v538
        %v894 = vadd.f32 %v893, 1.0
        %v895 = vmul.f32 %v894, %v538
        %v896 = vand.u32 2147483647, %v538
        %vm897 = vcmp.lt.f32.partialorder %v896, 0.0004427343
        %v898 = vsel %vm897, %v895, %v892
        %v899 = vadd.f32 %v539, 1.0
        %v900 = vlog2.pop %v899
        %v901 = vmul.f32 %v900, 0.6931472
        %v902 = vmul.f32 -0.5, %v539
        %v903 = vadd.f32 %v902, 1.0
        %v904 = vmul.f32 %v903, %v539
        %v905 = vand.u32 2147483647, %v539
        %vm906 = vcmp.lt.f32.partialorder %v905, 0.0004427343
        %v907 = vsel %vm906, %v904, %v901
        %v908 = vadd.f32 %v540, 1.0
        %v909 = vlog2.pop %v908
        %v910 = vmul.f32 %v909, 0.6931472
        %v911 = vmul.f32 -0.5, %v540
        %v912 = vadd.f32 %v911, 1.0
        %v913 = vmul.f32 %v912, %v540
        %v914 = vand.u32 2147483647, %v540
        %vm915 = vcmp.lt.f32.partialorder %v914, 0.0004427343
        %v916 = vsel %vm915, %v913, %v910
        %v917 = vadd.f32 %v541, 1.0
        %v918 = vlog2.pop %v917
        %v919 = vmul.f32 %v918, 0.6931472
        %v920 = vmul.f32 -0.5, %v541
        %v921 = vadd.f32 %v920, 1.0
        %v922 = vmul.f32 %v921, %v541
        %v923 = vand.u32 2147483647, %v541
        %vm924 = vcmp.lt.f32.partialorder %v923, 0.0004427343
        %v925 = vsel %vm924, %v922, %v919
        %v926 = vadd.f32 %v542, 1.0
        %v927 = vlog2.pop %v926
        %v928 = vmul.f32 %v927, 0.6931472
        %v929 = vmul.f32 -0.5, %v542
        %v930 = vadd.f32 %v929, 1.0
        %v931 = vmul.f32 %v930, %v542
        %v932 = vand.u32 2147483647, %v542
        %vm933 = vcmp.lt.f32.partialorder %v932, 0.0004427343
        %v934 = vsel %vm933, %v931, %v928
        %v935 = vadd.f32 %v543, 1.0
        %v936 = vlog2.pop %v935
        %v937 = vmul.f32 %v936, 0.6931472
        %v938 = vmul.f32 -0.5, %v543
        %v939 = vadd.f32 %v938, 1.0
        %v940 = vmul.f32 %v939, %v543
        %v941 = vand.u32 2147483647, %v543
        %vm942 = vcmp.lt.f32.partialorder %v941, 0.0004427343
        %v943 = vsel %vm942, %v940, %v937
        %v944 = vadd.f32 %v544, 1.0
        %v945 = vlog2.pop %v944
        %v946 = vmul.f32 %v945, 0.6931472
        %v947 = vmul.f32 -0.5, %v544
        %v948 = vadd.f32 %v947, 1.0
        %v949 = vmul.f32 %v948, %v544
        %v950 = vand.u32 2147483647, %v544
        %vm951 = vcmp.lt.f32.partialorder %v950, 0.0004427343
        %v952 = vsel %vm951, %v949, %v946
        %v953 = vadd.f32 %v545, 1.0
        %v954 = vlog2.pop %v953
        %v955 = vmul.f32 %v954, 0.6931472
        %v956 = vmul.f32 -0.5, %v545
        %v957 = vadd.f32 %v956, 1.0
        %v958 = vmul.f32 %v957, %v545
        %v959 = vand.u32 2147483647, %v545
        %vm960 = vcmp.lt.f32.partialorder %v959, 0.0004427343
        %v961 = vsel %vm960, %v958, %v955
        %v962 = vadd.f32 %v546, 1.0
        %v963 = vlog2.pop %v962
        %v964 = vmul.f32 %v963, 0.6931472
        %v965 = vmul.f32 -0.5, %v546
        %v966 = vadd.f32 %v965, 1.0
        %v967 = vmul.f32 %v966, %v546
        %v968 = vand.u32 2147483647, %v546
        %vm969 = vcmp.lt.f32.partialorder %v968, 0.0004427343
        %v970 = vsel %vm969, %v967, %v964
        %v971 = vadd.f32 %v547, 1.0
        %v972 = vlog2.pop %v971
        %v973 = vmul.f32 %v972, 0.6931472
        %v974 = vmul.f32 -0.5, %v547
        %v975 = vadd.f32 %v974, 1.0
        %v976 = vmul.f32 %v975, %v547
        %v977 = vand.u32 2147483647, %v547
        %vm978 = vcmp.lt.f32.partialorder %v977, 0.0004427343
        %v979 = vsel %vm978, %v976, %v973
        %v980 = vadd.f32 %v548, 1.0
        %v981 = vlog2.pop %v980
        %v982 = vmul.f32 %v981, 0.6931472
        %v983 = vmul.f32 -0.5, %v548
        %v984 = vadd.f32 %v983, 1.0
        %v985 = vmul.f32 %v984, %v548
        %v986 = vand.u32 2147483647, %v548
        %vm987 = vcmp.lt.f32.partialorder %v986, 0.0004427343
        %v988 = vsel %vm987, %v985, %v982
        %v989 = vadd.f32 %v549, 1.0
        %v990 = vlog2.pop %v989
        %v991 = vmul.f32 %v990, 0.6931472
        %v992 = vmul.f32 -0.5, %v549
        %v993 = vadd.f32 %v992, 1.0
        %v994 = vmul.f32 %v993, %v549
        %v995 = vand.u32 2147483647, %v549
        %vm996 = vcmp.lt.f32.partialorder %v995, 0.0004427343
        %v997 = vsel %vm996, %v994, %v991
        %v998 = vadd.f32 %v550, 1.0
        %v999 = vlog2.pop %v998
        %v1000 = vmul.f32 %v999, 0.6931472
        %v1001 = vmul.f32 -0.5, %v550
        %v1002 = vadd.f32 %v1001, 1.0
        %v1003 = vmul.f32 %v1002, %v550
        %v1004 = vand.u32 2147483647, %v550
        %vm1005 = vcmp.lt.f32.partialorder %v1004, 0.0004427343
        %v1006 = vsel %vm1005, %v1003, %v1000
        %v1007 = vadd.f32 %v551, 1.0
        %v1008 = vlog2.pop %v1007
        %v1009 = vmul.f32 %v1008, 0.6931472
        %v1010 = vmul.f32 -0.5, %v551
        %v1011 = vadd.f32 %v1010, 1.0
        %v1012 = vmul.f32 %v1011, %v551
        %v1013 = vand.u32 2147483647, %v551
        %vm1014 = vcmp.lt.f32.partialorder %v1013, 0.0004427343
        %v1015 = vsel %vm1014, %v1012, %v1009
        %v1016 = vadd.f32 %v552, 1.0
        %v1017 = vlog2.pop %v1016
        %v1018 = vmul.f32 %v1017, 0.6931472
        %v1019 = vmul.f32 -0.5, %v552
        %v1020 = vadd.f32 %v1019, 1.0
        %v1021 = vmul.f32 %v1020, %v552
        %v1022 = vand.u32 2147483647, %v552
        %vm1023 = vcmp.lt.f32.partialorder %v1022, 0.0004427343
        %v1024 = vsel %vm1023, %v1021, %v1018
        %v1025 = vadd.f32 %v553, 1.0
        %v1026 = vlog2.pop %v1025
        %v1027 = vmul.f32 %v1026, 0.6931472
        %v1028 = vmul.f32 -0.5, %v553
        %v1029 = vadd.f32 %v1028, 1.0
        %v1030 = vmul.f32 %v1029, %v553
        %v1031 = vand.u32 2147483647, %v553
        %vm1032 = vcmp.lt.f32.partialorder %v1031, 0.0004427343
        %v1033 = vsel %vm1032, %v1030, %v1027
        %v1034 = vadd.f32 %v554, 1.0
        %v1035 = vlog2.pop %v1034
        %v1036 = vmul.f32 %v1035, 0.6931472
        %v1037 = vmul.f32 -0.5, %v554
        %v1038 = vadd.f32 %v1037, 1.0
        %v1039 = vmul.f32 %v1038, %v554
        %v1040 = vand.u32 2147483647, %v554
        %vm1041 = vcmp.lt.f32.partialorder %v1040, 0.0004427343
        %v1042 = vsel %vm1041, %v1039, %v1036
        %v1043 = vadd.f32 %v555, 1.0
        %v1044 = vlog2.pop %v1043
        %v1045 = vmul.f32 %v1044, 0.6931472
        %v1046 = vmul.f32 -0.5, %v555
        %v1047 = vadd.f32 %v1046, 1.0
        %v1048 = vmul.f32 %v1047, %v555
        %v1049 = vand.u32 2147483647, %v555
        %vm1050 = vcmp.lt.f32.partialorder %v1049, 0.0004427343
        %v1051 = vsel %vm1050, %v1048, %v1045
        %v1052 = vadd.f32 %v556, 1.0
        %v1053 = vlog2.pop %v1052
        %v1054 = vmul.f32 %v1053, 0.6931472
        %v1055 = vmul.f32 -0.5, %v556
        %v1056 = vadd.f32 %v1055, 1.0
        %v1057 = vmul.f32 %v1056, %v556
        %v1058 = vand.u32 2147483647, %v556
        %vm1059 = vcmp.lt.f32.partialorder %v1058, 0.0004427343
        %v1060 = vsel %vm1059, %v1057, %v1054
        %v1061 = vadd.f32 %v557, 1.0
        %v1062 = vlog2.pop %v1061
        %v1063 = vmul.f32 %v1062, 0.6931472
        %v1064 = vmul.f32 -0.5, %v557
        %v1065 = vadd.f32 %v1064, 1.0
        %v1066 = vmul.f32 %v1065, %v557
        %v1067 = vand.u32 2147483647, %v557
        %vm1068 = vcmp.lt.f32.partialorder %v1067, 0.0004427343
        %v1069 = vsel %vm1068, %v1066, %v1063
        %v1070 = vadd.f32 %v558, 1.0
        %v1071 = vlog2.pop %v1070
        %v1072 = vmul.f32 %v1071, 0.6931472
        %v1073 = vmul.f32 -0.5, %v558
        %v1074 = vadd.f32 %v1073, 1.0
        %v1075 = vmul.f32 %v1074, %v558
        %v1076 = vand.u32 2147483647, %v558
        %vm1077 = vcmp.lt.f32.partialorder %v1076, 0.0004427343
        %v1078 = vsel %vm1077, %v1075, %v1072
        %v1079 = vadd.f32 %v559, 1.0
        %v1080 = vlog2.pop %v1079
        %v1081 = vmul.f32 %v1080, 0.6931472
        %v1082 = vmul.f32 -0.5, %v559
        %v1083 = vadd.f32 %v1082, 1.0
        %v1084 = vmul.f32 %v1083, %v559
        %v1085 = vand.u32 2147483647, %v559
        %vm1086 = vcmp.lt.f32.partialorder %v1085, 0.0004427343
        %v1087 = vsel %vm1086, %v1084, %v1081
        %v1088 = vadd.f32 %v560, 1.0
        %v1089 = vlog2.pop %v1088
        %v1090 = vmul.f32 %v1089, 0.6931472
        %v1091 = vmul.f32 -0.5, %v560
        %v1092 = vadd.f32 %v1091, 1.0
        %v1093 = vmul.f32 %v1092, %v560
        %v1094 = vand.u32 2147483647, %v560
        %vm1095 = vcmp.lt.f32.partialorder %v1094, 0.0004427343
        %v1096 = vsel %vm1095, %v1093, %v1090
        %v1097 = vadd.f32 %v561, 1.0
        %v1098 = vlog2.pop %v1097
        %v1099 = vmul.f32 %v1098, 0.6931472
        %v1100 = vmul.f32 -0.5, %v561
        %v1101 = vadd.f32 %v1100, 1.0
        %v1102 = vmul.f32 %v1101, %v561
        %v1103 = vand.u32 2147483647, %v561
        %vm1104 = vcmp.lt.f32.partialorder %v1103, 0.0004427343
        %v1105 = vsel %vm1104, %v1102, %v1099
        %v1106 = vadd.f32 %v562, 1.0
        %v1107 = vlog2.pop %v1106
        %v1108 = vmul.f32 %v1107, 0.6931472
        %v1109 = vmul.f32 -0.5, %v562
        %v1110 = vadd.f32 %v1109, 1.0
        %v1111 = vmul.f32 %v1110, %v562
        %v1112 = vand.u32 2147483647, %v562
        %vm1113 = vcmp.lt.f32.partialorder %v1112, 0.0004427343
        %v1114 = vsel %vm1113, %v1111, %v1108
        %v1115 = vadd.f32 %v563, 1.0
        %v1116 = vlog2.pop %v1115
        %v1117 = vmul.f32 %v1116, 0.6931472
        %v1118 = vmul.f32 -0.5, %v563
        %v1119 = vadd.f32 %v1118, 1.0
        %v1120 = vmul.f32 %v1119, %v563
        %v1121 = vand.u32 2147483647, %v563
        %vm1122 = vcmp.lt.f32.partialorder %v1121, 0.0004427343
        %v1123 = vsel %vm1122, %v1120, %v1117
        %v1124 = vadd.f32 %v564, 1.0
        %v1125 = vlog2.pop %v1124
        %v1126 = vmul.f32 %v1125, 0.6931472
        %v1127 = vmul.f32 -0.5, %v564
        %v1128 = vadd.f32 %v1127, 1.0
        %v1129 = vmul.f32 %v1128, %v564
        %v1130 = vand.u32 2147483647, %v564
        %vm1131 = vcmp.lt.f32.partialorder %v1130, 0.0004427343
        %v1132 = vsel %vm1131, %v1129, %v1126
        %v1133 = vadd.f32 %v565, 1.0
        %v1134 = vlog2.pop %v1133
        %v1135 = vmul.f32 %v1134, 0.6931472
        %v1136 = vmul.f32 -0.5, %v565
        %v1137 = vadd.f32 %v1136, 1.0
        %v1138 = vmul.f32 %v1137, %v565
        %v1139 = vand.u32 2147483647, %v565
        %vm1140 = vcmp.lt.f32.partialorder %v1139, 0.0004427343
        %v1141 = vsel %vm1140, %v1138, %v1135
        %v1142 = vpack.c.bf16 %v592, %v574
        %v1143 = vpack.c.bf16 %v601, %v583
        %v1144 = vpack.c.bf16 %v628, %v610
        %v1145 = vpack.c.bf16 %v637, %v619
        %v1146 = vpack.c.bf16 %v664, %v646
        %v1147 = vpack.c.bf16 %v673, %v655
        %v1148 = vpack.c.bf16 %v700, %v682
        %v1149 = vpack.c.bf16 %v709, %v691
        %v1150 = vpack.c.bf16 %v736, %v718
        %v1151 = vpack.c.bf16 %v745, %v727
        %v1152 = vpack.c.bf16 %v772, %v754
        %v1153 = vpack.c.bf16 %v781, %v763
        %v1154 = vpack.c.bf16 %v808, %v790
        %v1155 = vpack.c.bf16 %v817, %v799
        %v1156 = vpack.c.bf16 %v844, %v826
        %v1157 = vpack.c.bf16 %v853, %v835
        %v1158 = vpack.c.bf16 %v880, %v862
        %v1159 = vpack.c.bf16 %v889, %v871
        %v1160 = vpack.c.bf16 %v916, %v898
        %v1161 = vpack.c.bf16 %v925, %v907
        %v1162 = vpack.c.bf16 %v952, %v934
        %v1163 = vpack.c.bf16 %v961, %v943
        %v1164 = vpack.c.bf16 %v988, %v970
        %v1165 = vpack.c.bf16 %v997, %v979
        %v1166 = vpack.c.bf16 %v1024, %v1006
        %v1167 = vpack.c.bf16 %v1033, %v1015
        %v1168 = vpack.c.bf16 %v1060, %v1042
        %v1169 = vpack.c.bf16 %v1069, %v1051
        %v1170 = vpack.c.bf16 %v1096, %v1078
        %v1171 = vpack.c.bf16 %v1105, %v1087
        %v1172 = vpack.c.bf16 %v1132, %v1114
        %v1173 = vpack.c.bf16 %v1141, %v1123
        %v1174 = vld [vmem:[#allocation5] sm:$0xf]
        %v1175 = vld [vmem:[#allocation5 + $0x4] sm:$0xf]
        %v1176 = vld [vmem:[#allocation5 + $0x8] sm:$0xf]
        %v1177 = vld [vmem:[#allocation5 + $0xc] sm:$0xf]
        %v1178 = vld [vmem:[#allocation5 + $0x10] sm:$0xf]
        %v1179 = vld [vmem:[#allocation5 + $0x14] sm:$0xf]
        %v1180 = vld [vmem:[#allocation5 + $0x18] sm:$0xf]
        %v1181 = vld [vmem:[#allocation5 + $0x1c] sm:$0xf]
        %v1182 = vld [vmem:[#allocation5 + $0x20] sm:$0xf]
        %v1183 = vld [vmem:[#allocation5 + $0x24] sm:$0xf]
        %v1184 = vld [vmem:[#allocation5 + $0x28] sm:$0xf]
        %v1185 = vld [vmem:[#allocation5 + $0x2c] sm:$0xf]
        %v1186 = vld [vmem:[#allocation5 + $0x30] sm:$0xf]
        %v1187 = vld [vmem:[#allocation5 + $0x34] sm:$0xf]
        %v1188 = vld [vmem:[#allocation5 + $0x38] sm:$0xf]
        %v1189 = vld [vmem:[#allocation5 + $0x3c] sm:$0xf]
        %v1190 = vld [vmem:[#allocation5 + $0x40] sm:$0xf]
        %v1191 = vld [vmem:[#allocation5 + $0x44] sm:$0xf]
        %v1192 = vld [vmem:[#allocation5 + $0x48] sm:$0xf]
        %v1193 = vld [vmem:[#allocation5 + $0x4c] sm:$0xf]
        %v1194 = vld [vmem:[#allocation5 + $0x50] sm:$0xf]
        %v1195 = vld [vmem:[#allocation5 + $0x54] sm:$0xf]
        %v1196 = vld [vmem:[#allocation5 + $0x58] sm:$0xf]
        %v1197 = vld [vmem:[#allocation5 + $0x5c] sm:$0xf]
        %v1198 = vld [vmem:[#allocation5 + $0x60] sm:$0xf]
        %v1199 = vld [vmem:[#allocation5 + $0x64] sm:$0xf]
        %v1200 = vld [vmem:[#allocation5 + $0x68] sm:$0xf]
        %v1201 = vld [vmem:[#allocation5 + $0x6c] sm:$0xf]
        %v1202 = vld [vmem:[#allocation5 + $0x70] sm:$0xf]
        %v1203 = vld [vmem:[#allocation5 + $0x74] sm:$0xf]
        %v1204 = vld [vmem:[#allocation5 + $0x78] sm:$0xf]
        %v1205 = vld [vmem:[#allocation5 + $0x7c] sm:$0xf]
        %v1206 = vld [vmem:[#allocation7] sm:$0x1]
        %v1208 = vlaneseq
        %v1209 = vshrl.u32 %v1208, 7
        %v1210 = vsub.s32 0, %v1209
        %v1211 = vrot.slane %v1206, %v1210
        %v1245 = vunpack.c.l.b16 %v1174
        %v1246 = vunpack.c.l.b16 %v1175
        %v1247 = vunpack.c.l.b16 %v1176
        %v1248 = vunpack.c.l.b16 %v1177
        %v1249 = vunpack.c.l.b16 %v1178
        %v1250 = vunpack.c.l.b16 %v1179
        %v1251 = vunpack.c.l.b16 %v1180
        %v1252 = vunpack.c.l.b16 %v1181
        %v1253 = vunpack.c.l.b16 %v1182
        %v1254 = vunpack.c.l.b16 %v1183
        %v1255 = vunpack.c.l.b16 %v1184
        %v1256 = vunpack.c.l.b16 %v1185
        %v1257 = vunpack.c.l.b16 %v1186
        %v1258 = vunpack.c.l.b16 %v1187
        %v1259 = vunpack.c.l.b16 %v1188
        %v1260 = vunpack.c.l.b16 %v1189
        %v1261 = vunpack.c.l.b16 %v1190
        %v1262 = vunpack.c.l.b16 %v1191
        %v1263 = vunpack.c.l.b16 %v1192
        %v1264 = vunpack.c.l.b16 %v1193
        %v1265 = vunpack.c.l.b16 %v1194
        %v1266 = vunpack.c.l.b16 %v1195
        %v1267 = vunpack.c.l.b16 %v1196
        %v1268 = vunpack.c.l.b16 %v1197
        %v1269 = vunpack.c.l.b16 %v1198
        %v1270 = vunpack.c.l.b16 %v1199
        %v1271 = vunpack.c.l.b16 %v1200
        %v1272 = vunpack.c.l.b16 %v1201
        %v1273 = vunpack.c.l.b16 %v1202
        %v1274 = vunpack.c.l.b16 %v1203
        %v1275 = vunpack.c.l.b16 %v1204
        %v1276 = vunpack.c.l.b16 %v1205
        %v1277 = vpack.c.b16 %v1246, %v1245
        %v1278 = vpack.c.b16 %v1248, %v1247
        %v1279 = vpack.c.b16 %v1250, %v1249
        %v1280 = vpack.c.b16 %v1252, %v1251
        %v1281 = vpack.c.b16 %v1254, %v1253
        %v1282 = vpack.c.b16 %v1256, %v1255
        %v1283 = vpack.c.b16 %v1258, %v1257
        %v1284 = vpack.c.b16 %v1260, %v1259
        %v1285 = vpack.c.b16 %v1262, %v1261
        %v1286 = vpack.c.b16 %v1264, %v1263
        %v1287 = vpack.c.b16 %v1266, %v1265
        %v1288 = vpack.c.b16 %v1268, %v1267
        %v1289 = vpack.c.b16 %v1270, %v1269
        %v1290 = vpack.c.b16 %v1272, %v1271
        %v1291 = vpack.c.b16 %v1274, %v1273
        %v1292 = vpack.c.b16 %v1276, %v1275
        %1309 = vmatprep.subr.bf16.mxu0 0
        %1310 = vmatpush1.bf16.msra.mxu0 %v1277
        %1311 = vmatprep.subr.bf16.mxu0 0
        %1312 = vmatpush1.bf16.msra.mxu0 %v1278
        %1313 = vmatprep.subr.bf16.mxu0 0
        %1314 = vmatpush1.bf16.msra.mxu0 %v1279
        %1315 = vmatprep.subr.bf16.mxu0 0
        %1316 = vmatpush1.bf16.msra.mxu0 %v1280
        %1317 = vmatprep.subr.bf16.mxu0 0
        %1318 = vmatpush1.bf16.msra.mxu0 %v1281
        %1319 = vmatprep.subr.bf16.mxu0 0
        %1320 = vmatpush1.bf16.msra.mxu0 %v1282
        %1321 = vmatprep.subr.bf16.mxu0 0
        %1322 = vmatpush1.bf16.msra.mxu0 %v1283
        %1323 = vmatprep.subr.bf16.mxu0 0
        %1324 = vmatpush1.bf16.msra.mxu0 %v1284
        %1325 = vmatprep.subr.bf16.mxu0 0
        %1326 = vmatpush1.bf16.msra.mxu0 %v1285
        %1327 = vmatprep.subr.bf16.mxu0 0
        %1328 = vmatpush1.bf16.msra.mxu0 %v1286
        %1329 = vmatprep.subr.bf16.mxu0 0
        %1330 = vmatpush1.bf16.msra.mxu0 %v1287
        %1331 = vmatprep.subr.bf16.mxu0 0
        %1332 = vmatpush1.bf16.msra.mxu0 %v1288
        %1333 = vmatprep.subr.bf16.mxu0 0
        %1334 = vmatpush1.bf16.msra.mxu0 %v1289
        %1335 = vmatprep.subr.bf16.mxu0 0
        %1336 = vmatpush1.bf16.msra.mxu0 %v1290
        %1337 = vmatprep.subr.bf16.mxu0 0
        %1338 = vmatpush1.bf16.msra.mxu0 %v1291
        %1339 = vmatprep.subr.bf16.mxu0 0
        %1340 = vmatpush1.bf16.msra.mxu0 %v1292
        %1341 = vmatprep.mubr.bf16.mxu0 %v1143
        %1342 = vmatmul.mubr.bf16.gmra.mrb[0].mxu0 %v1142
        %v1343 = vpop.f32.mrb[0].mxu0
        %v1344 = vadd.f32 %v1211, %v1343
        %v1345 = vpop.f32.mrb[0].mxu0
        %v1346 = vpop.f32.mrb[0].mxu0
        %v1347 = vadd.f32 %v1211, %v1346
        %v1348 = vpop.f32.mrb[0].mxu0
        %1349 = vmatprep.mubr.bf16.mxu0 %v1145
        %1350 = vmatmul.mubr.bf16.gmra.mrb[0].mxu0 %v1144
        %v1351 = vpop.f32.mrb[0].mxu0
        %v1352 = vadd.f32 %v1211, %v1351
        %v1353 = vpop.f32.mrb[0].mxu0
        %v1354 = vpop.f32.mrb[0].mxu0
        %v1355 = vadd.f32 %v1211, %v1354
        %v1356 = vpop.f32.mrb[0].mxu0
        %1357 = vmatprep.mubr.bf16.mxu0 %v1147
        %1358 = vmatmul.mubr.bf16.gmra.mrb[0].mxu0 %v1146
        %v1359 = vpop.f32.mrb[0].mxu0
        %v1360 = vadd.f32 %v1211, %v1359
        %v1361 = vpop.f32.mrb[0].mxu0
        %v1362 = vpop.f32.mrb[0].mxu0
        %v1363 = vadd.f32 %v1211, %v1362
        %v1364 = vpop.f32.mrb[0].mxu0
        %1365 = vmatprep.mubr.bf16.mxu0 %v1149
        %1366 = vmatmul.mubr.bf16.gmra.mrb[0].mxu0 %v1148
        %v1367 = vpop.f32.mrb[0].mxu0
        %v1368 = vadd.f32 %v1211, %v1367
        %v1369 = vpop.f32.mrb[0].mxu0
        %v1370 = vpop.f32.mrb[0].mxu0
        %v1371 = vadd.f32 %v1211, %v1370
        %v1372 = vpop.f32.mrb[0].mxu0
        %1373 = vmatprep.mubr.bf16.mxu0 %v1151
        %1374 = vmatmul.mubr.bf16.gmra.mrb[0].mxu0 %v1150
        %v1375 = vpop.f32.mrb[0].mxu0
        %v1376 = vadd.f32 %v1211, %v1375
        %v1377 = vpop.f32.mrb[0].mxu0
        %v1378 = vpop.f32.mrb[0].mxu0
        %v1379 = vadd.f32 %v1211, %v1378
        %v1380 = vpop.f32.mrb[0].mxu0
        %1381 = vmatprep.mubr.bf16.mxu0 %v1153
        %1382 = vmatmul.mubr.bf16.gmra.mrb[0].mxu0 %v1152
        %v1383 = vpop.f32.mrb[0].mxu0
        %v1384 = vadd.f32 %v1211, %v1383
        %v1385 = vpop.f32.mrb[0].mxu0
        %v1386 = vpop.f32.mrb[0].mxu0
        %v1387 = vadd.f32 %v1211, %v1386
        %v1388 = vpop.f32.mrb[0].mxu0
        %1389 = vmatprep.mubr.bf16.mxu0 %v1155
        %1390 = vmatmul.mubr.bf16.gmra.mrb[0].mxu0 %v1154
        %v1391 = vpop.f32.mrb[0].mxu0
        %v1392 = vadd.f32 %v1211, %v1391
        %v1393 = vpop.f32.mrb[0].mxu0
        %v1394 = vpop.f32.mrb[0].mxu0
        %v1395 = vadd.f32 %v1211, %v1394
        %v1396 = vpop.f32.mrb[0].mxu0
        %1397 = vmatprep.mubr.bf16.mxu0 %v1157
        %1398 = vmatmul.mubr.bf16.gmra.mrb[0].mxu0 %v1156
        %v1399 = vpop.f32.mrb[0].mxu0
        %v1400 = vadd.f32 %v1211, %v1399
        %v1401 = vpop.f32.mrb[0].mxu0
        %v1402 = vpop.f32.mrb[0].mxu0
        %v1403 = vadd.f32 %v1211, %v1402
        %v1404 = vpop.f32.mrb[0].mxu0
        %1405 = vmatprep.mubr.bf16.mxu0 %v1159
        %1406 = vmatmul.mubr.bf16.gmra.mrb[0].mxu0 %v1158
        %v1407 = vpop.f32.mrb[0].mxu0
        %v1408 = vadd.f32 %v1211, %v1407
        %v1409 = vpop.f32.mrb[0].mxu0
        %v1410 = vpop.f32.mrb[0].mxu0
        %v1411 = vadd.f32 %v1211, %v1410
        %v1412 = vpop.f32.mrb[0].mxu0
        %1413 = vmatprep.mubr.bf16.mxu0 %v1161
        %1414 = vmatmul.mubr.bf16.gmra.mrb[0].mxu0 %v1160
        %v1415 = vpop.f32.mrb[0].mxu0
        %v1416 = vadd.f32 %v1211, %v1415
        %v1417 = vpop.f32.mrb[0].mxu0
        %v1418 = vpop.f32.mrb[0].mxu0
        %v1419 = vadd.f32 %v1211, %v1418
        %v1420 = vpop.f32.mrb[0].mxu0
        %1421 = vmatprep.mubr.bf16.mxu0 %v1163
        %1422 = vmatmul.mubr.bf16.gmra.mrb[0].mxu0 %v1162
        %v1423 = vpop.f32.mrb[0].mxu0
        %v1424 = vadd.f32 %v1211, %v1423
        %v1425 = vpop.f32.mrb[0].mxu0
        %v1426 = vpop.f32.mrb[0].mxu0
        %v1427 = vadd.f32 %v1211, %v1426
        %v1428 = vpop.f32.mrb[0].mxu0
        %1429 = vmatprep.mubr.bf16.mxu0 %v1165
        %1430 = vmatmul.mubr.bf16.gmra.mrb[0].mxu0 %v1164
        %v1431 = vpop.f32.mrb[0].mxu0
        %v1432 = vadd.f32 %v1211, %v1431
        %v1433 = vpop.f32.mrb[0].mxu0
        %v1434 = vpop.f32.mrb[0].mxu0
        %v1435 = vadd.f32 %v1211, %v1434
        %v1436 = vpop.f32.mrb[0].mxu0
        %1437 = vmatprep.mubr.bf16.mxu0 %v1167
        %1438 = vmatmul.mubr.bf16.gmra.mrb[0].mxu0 %v1166
        %v1439 = vpop.f32.mrb[0].mxu0
        %v1440 = vadd.f32 %v1211, %v1439
        %v1441 = vpop.f32.mrb[0].mxu0
        %v1442 = vpop.f32.mrb[0].mxu0
        %v1443 = vadd.f32 %v1211, %v1442
        %v1444 = vpop.f32.mrb[0].mxu0
        %1445 = vmatprep.mubr.bf16.mxu0 %v1169
        %1446 = vmatmul.mubr.bf16.gmra.mrb[0].mxu0 %v1168
        %v1447 = vpop.f32.mrb[0].mxu0
        %v1448 = vadd.f32 %v1211, %v1447
        %v1449 = vpop.f32.mrb[0].mxu0
        %v1450 = vpop.f32.mrb[0].mxu0
        %v1451 = vadd.f32 %v1211, %v1450
        %v1452 = vpop.f32.mrb[0].mxu0
        %1453 = vmatprep.mubr.bf16.mxu0 %v1171
        %1454 = vmatmul.mubr.bf16.gmra.mrb[0].mxu0 %v1170
        %v1455 = vpop.f32.mrb[0].mxu0
        %v1456 = vadd.f32 %v1211, %v1455
        %v1457 = vpop.f32.mrb[0].mxu0
        %v1458 = vpop.f32.mrb[0].mxu0
        %v1459 = vadd.f32 %v1211, %v1458
        %v1460 = vpop.f32.mrb[0].mxu0
        %1461 = vmatprep.mubr.bf16.mxu0 %v1173
        %1462 = vmatmul.mubr.bf16.gmra.mrb[0].mxu0 %v1172
        %v1463 = vpop.f32.mrb[0].mxu0
        %v1464 = vadd.f32 %v1211, %v1463
        %v1465 = vpop.f32.mrb[0].mxu0
        %v1466 = vpop.f32.mrb[0].mxu0
        %v1467 = vadd.f32 %v1211, %v1466
        %v1468 = vpop.f32.mrb[0].mxu0
        %1469 = vdwg.mxu0
        %v1470 = vmax.f32 %v1344, 0.0
        %v1471 = vmax.f32 %v1347, 0.0
        %v1472 = vmax.f32 %v1352, 0.0
        %v1473 = vmax.f32 %v1355, 0.0
        %v1474 = vmax.f32 %v1360, 0.0
        %v1475 = vmax.f32 %v1363, 0.0
        %v1476 = vmax.f32 %v1368, 0.0
        %v1477 = vmax.f32 %v1371, 0.0
        %v1478 = vmax.f32 %v1376, 0.0
        %v1479 = vmax.f32 %v1379, 0.0
        %v1480 = vmax.f32 %v1384, 0.0
        %v1481 = vmax.f32 %v1387, 0.0
        %v1482 = vmax.f32 %v1392, 0.0
        %v1483 = vmax.f32 %v1395, 0.0
        %v1484 = vmax.f32 %v1400, 0.0
        %v1485 = vmax.f32 %v1403, 0.0
        %v1486 = vmax.f32 %v1408, 0.0
        %v1487 = vmax.f32 %v1411, 0.0
        %v1488 = vmax.f32 %v1416, 0.0
        %v1489 = vmax.f32 %v1419, 0.0
        %v1490 = vmax.f32 %v1424, 0.0
        %v1491 = vmax.f32 %v1427, 0.0
        %v1492 = vmax.f32 %v1432, 0.0
        %v1493 = vmax.f32 %v1435, 0.0
        %v1494 = vmax.f32 %v1440, 0.0
        %v1495 = vmax.f32 %v1443, 0.0
        %v1496 = vmax.f32 %v1448, 0.0
        %v1497 = vmax.f32 %v1451, 0.0
        %v1498 = vmax.f32 %v1456, 0.0
        %v1499 = vmax.f32 %v1459, 0.0
        %v1500 = vmax.f32 %v1464, 0.0
        %v1501 = vmax.f32 %v1467, 0.0
        %v1502 = vpack.c.bf16 %v1471, %v1470
        %v1503 = vpack.c.bf16 %v1473, %v1472
        %v1504 = vpack.c.bf16 %v1475, %v1474
        %v1505 = vpack.c.bf16 %v1477, %v1476
        %v1506 = vpack.c.bf16 %v1479, %v1478
        %v1507 = vpack.c.bf16 %v1481, %v1480
        %v1508 = vpack.c.bf16 %v1483, %v1482
        %v1509 = vpack.c.bf16 %v1485, %v1484
        %v1510 = vpack.c.bf16 %v1487, %v1486
        %v1511 = vpack.c.bf16 %v1489, %v1488
        %v1512 = vpack.c.bf16 %v1491, %v1490
        %v1513 = vpack.c.bf16 %v1493, %v1492
        %v1514 = vpack.c.bf16 %v1495, %v1494
        %v1515 = vpack.c.bf16 %v1497, %v1496
        %v1516 = vpack.c.bf16 %v1499, %v1498
        %v1517 = vpack.c.bf16 %v1501, %v1500
        %v1518 = vld [vmem:[#allocation8] sm:$0xf]
        %v1519 = vld [vmem:[#allocation8 + $0x4] sm:$0xf]
        %v1520 = vld [vmem:[#allocation8 + $0x8] sm:$0xf]
        %v1521 = vld [vmem:[#allocation8 + $0xc] sm:$0xf]
        %v1522 = vld [vmem:[#allocation8 + $0x10] sm:$0xf]
        %v1523 = vld [vmem:[#allocation8 + $0x14] sm:$0xf]
        %v1524 = vld [vmem:[#allocation8 + $0x18] sm:$0xf]
        %v1525 = vld [vmem:[#allocation8 + $0x1c] sm:$0xf]
        %v1526 = vld [vmem:[#allocation8 + $0x20] sm:$0xf]
        %v1527 = vld [vmem:[#allocation8 + $0x24] sm:$0xf]
        %v1528 = vld [vmem:[#allocation8 + $0x28] sm:$0xf]
        %v1529 = vld [vmem:[#allocation8 + $0x2c] sm:$0xf]
        %v1530 = vld [vmem:[#allocation8 + $0x30] sm:$0xf]
        %v1531 = vld [vmem:[#allocation8 + $0x34] sm:$0xf]
        %v1532 = vld [vmem:[#allocation8 + $0x38] sm:$0xf]
        %v1533 = vld [vmem:[#allocation8 + $0x3c] sm:$0xf]
        %v1534 = vld [vmem:[#allocation10] sm:$0x1]
        %v1536 = vlaneseq
        %v1537 = vshrl.u32 %v1536, 7
        %v1538 = vsub.s32 0, %v1537
        %v1539 = vrot.slane %v1534, %v1538
        %v1557 = vunpack.c.l.b16 %v1518
        %v1558 = vunpack.c.l.b16 %v1519
        %v1559 = vunpack.c.l.b16 %v1520
        %v1560 = vunpack.c.l.b16 %v1521
        %v1561 = vunpack.c.l.b16 %v1522
        %v1562 = vunpack.c.l.b16 %v1523
        %v1563 = vunpack.c.l.b16 %v1524
        %v1564 = vunpack.c.l.b16 %v1525
        %v1565 = vunpack.c.l.b16 %v1526
        %v1566 = vunpack.c.l.b16 %v1527
        %v1567 = vunpack.c.l.b16 %v1528
        %v1568 = vunpack.c.l.b16 %v1529
        %v1569 = vunpack.c.l.b16 %v1530
        %v1570 = vunpack.c.l.b16 %v1531
        %v1571 = vunpack.c.l.b16 %v1532
        %v1572 = vunpack.c.l.b16 %v1533
        %v1573 = vpack.c.b16 %v1558, %v1557
        %v1574 = vpack.c.b16 %v1560, %v1559
        %v1575 = vpack.c.b16 %v1562, %v1561
        %v1576 = vpack.c.b16 %v1564, %v1563
        %v1577 = vpack.c.b16 %v1566, %v1565
        %v1578 = vpack.c.b16 %v1568, %v1567
        %v1579 = vpack.c.b16 %v1570, %v1569
        %v1580 = vpack.c.b16 %v1572, %v1571
        %1589 = vmatprep.subr.bf16.mxu0 0
        %1590 = vmatpush1.bf16.msra.mxu0 %v1573
        %1591 = vmatprep.subr.bf16.mxu0 0
        %1592 = vmatpush1.bf16.msra.mxu0 %v1574
        %1593 = vmatprep.subr.bf16.mxu0 0
        %1594 = vmatpush1.bf16.msra.mxu0 %v1575
        %1595 = vmatprep.subr.bf16.mxu0 0
        %1596 = vmatpush1.bf16.msra.mxu0 %v1576
        %1597 = vmatprep.subr.bf16.mxu0 0
        %1598 = vmatpush1.bf16.msra.mxu0 %v1577
        %1599 = vmatprep.subr.bf16.mxu0 0
        %1600 = vmatpush1.bf16.msra.mxu0 %v1578
        %1601 = vmatprep.subr.bf16.mxu0 0
        %1602 = vmatpush1.bf16.msra.mxu0 %v1579
        %1603 = vmatprep.subr.bf16.mxu0 0
        %1604 = vmatpush1.bf16.msra.mxu0 %v1580
        %1605 = vmatprep.subr.bf16.mxu0 0
        %1606 = vmatpush1.bf16.msra.mxu0 0
        %1607 = vmatprep.subr.bf16.mxu0 0
        %1608 = vmatpush1.bf16.msra.mxu0 0
        %1609 = vmatprep.subr.bf16.mxu0 0
        %1610 = vmatpush1.bf16.msra.mxu0 0
        %1611 = vmatprep.subr.bf16.mxu0 0
        %1612 = vmatpush1.bf16.msra.mxu0 0
        %1613 = vmatprep.subr.bf16.mxu0 0
        %1614 = vmatpush1.bf16.msra.mxu0 0
        %1615 = vmatprep.subr.bf16.mxu0 0
        %1616 = vmatpush1.bf16.msra.mxu0 0
        %1617 = vmatprep.subr.bf16.mxu0 0
        %1618 = vmatpush1.bf16.msra.mxu0 0
        %1619 = vmatprep.subr.bf16.mxu0 0
        %1620 = vmatpush1.bf16.msra.mxu0 0
        %1621 = vmatprep.mubr.bf16.mxu0 0
        %1622 = vmatmul.mubr.bf16.gmra.mrb[0].mxu0 %v1502
        %v1623 = vpop.f32.mrb[0].mxu0
        %v1624 = vadd.f32 %v1539, %v1623
        %v1625 = vpop.f32.mrb[0].mxu0
        %v1626 = vpop.f32.mrb[0].mxu0
        %v1627 = vadd.f32 %v1539, %v1626
        %v1628 = vpop.f32.mrb[0].mxu0
        %1629 = vmatprep.mubr.bf16.mxu0 0
        %1630 = vmatmul.mubr.bf16.gmra.mrb[0].mxu0 %v1503
        %v1631 = vpop.f32.mrb[0].mxu0
        %v1632 = vadd.f32 %v1539, %v1631
        %v1633 = vpop.f32.mrb[0].mxu0
        %v1634 = vpop.f32.mrb[0].mxu0
        %v1635 = vadd.f32 %v1539, %v1634
        %v1636 = vpop.f32.mrb[0].mxu0
        %1637 = vmatprep.mubr.bf16.mxu0 0
        %1638 = vmatmul.mubr.bf16.gmra.mrb[0].mxu0 %v1504
        %v1639 = vpop.f32.mrb[0].mxu0
        %v1640 = vadd.f32 %v1539, %v1639
        %v1641 = vpop.f32.mrb[0].mxu0
        %v1642 = vpop.f32.mrb[0].mxu0
        %v1643 = vadd.f32 %v1539, %v1642
        %v1644 = vpop.f32.mrb[0].mxu0
        %1645 = vmatprep.mubr.bf16.mxu0 0
        %1646 = vmatmul.mubr.bf16.gmra.mrb[0].mxu0 %v1505
        %v1647 = vpop.f32.mrb[0].mxu0
        %v1648 = vadd.f32 %v1539, %v1647
        %v1649 = vpop.f32.mrb[0].mxu0
        %v1650 = vpop.f32.mrb[0].mxu0
        %v1651 = vadd.f32 %v1539, %v1650
        %v1652 = vpop.f32.mrb[0].mxu0
        %1653 = vmatprep.mubr.bf16.mxu0 0
        %1654 = vmatmul.mubr.bf16.gmra.mrb[0].mxu0 %v1506
        %v1655 = vpop.f32.mrb[0].mxu0
        %v1656 = vadd.f32 %v1539, %v1655
        %v1657 = vpop.f32.mrb[0].mxu0
        %v1658 = vpop.f32.mrb[0].mxu0
        %v1659 = vadd.f32 %v1539, %v1658
        %v1660 = vpop.f32.mrb[0].mxu0
        %1661 = vmatprep.mubr.bf16.mxu0 0
        %1662 = vmatmul.mubr.bf16.gmra.mrb[0].mxu0 %v1507
        %v1663 = vpop.f32.mrb[0].mxu0
        %v1664 = vadd.f32 %v1539, %v1663
        %v1665 = vpop.f32.mrb[0].mxu0
        %v1666 = vpop.f32.mrb[0].mxu0
        %v1667 = vadd.f32 %v1539, %v1666
        %v1668 = vpop.f32.mrb[0].mxu0
        %1669 = vmatprep.mubr.bf16.mxu0 0
        %1670 = vmatmul.mubr.bf16.gmra.mrb[0].mxu0 %v1508
        %v1671 = vpop.f32.mrb[0].mxu0
        %v1672 = vadd.f32 %v1539, %v1671
        %v1673 = vpop.f32.mrb[0].mxu0
        %v1674 = vpop.f32.mrb[0].mxu0
        %v1675 = vadd.f32 %v1539, %v1674
        %v1676 = vpop.f32.mrb[0].mxu0
        %1677 = vmatprep.mubr.bf16.mxu0 0
        %1678 = vmatmul.mubr.bf16.gmra.mrb[0].mxu0 %v1509
        %v1679 = vpop.f32.mrb[0].mxu0
        %v1680 = vadd.f32 %v1539, %v1679
        %v1681 = vpop.f32.mrb[0].mxu0
        %v1682 = vpop.f32.mrb[0].mxu0
        %v1683 = vadd.f32 %v1539, %v1682
        %v1684 = vpop.f32.mrb[0].mxu0
        %1685 = vmatprep.mubr.bf16.mxu0 0
        %1686 = vmatmul.mubr.bf16.gmra.mrb[0].mxu0 %v1510
        %v1687 = vpop.f32.mrb[0].mxu0
        %v1688 = vadd.f32 %v1539, %v1687
        %v1689 = vpop.f32.mrb[0].mxu0
        %v1690 = vpop.f32.mrb[0].mxu0
        %v1691 = vadd.f32 %v1539, %v1690
        %v1692 = vpop.f32.mrb[0].mxu0
        %1693 = vmatprep.mubr.bf16.mxu0 0
        %1694 = vmatmul.mubr.bf16.gmra.mrb[0].mxu0 %v1511
        %v1695 = vpop.f32.mrb[0].mxu0
        %v1696 = vadd.f32 %v1539, %v1695
        %v1697 = vpop.f32.mrb[0].mxu0
        %v1698 = vpop.f32.mrb[0].mxu0
        %v1699 = vadd.f32 %v1539, %v1698
        %v1700 = vpop.f32.mrb[0].mxu0
        %1701 = vmatprep.mubr.bf16.mxu0 0
        %1702 = vmatmul.mubr.bf16.gmra.mrb[0].mxu0 %v1512
        %v1703 = vpop.f32.mrb[0].mxu0
        %v1704 = vadd.f32 %v1539, %v1703
        %v1705 = vpop.f32.mrb[0].mxu0
        %v1706 = vpop.f32.mrb[0].mxu0
        %v1707 = vadd.f32 %v1539, %v1706
        %v1708 = vpop.f32.mrb[0].mxu0
        %1709 = vmatprep.mubr.bf16.mxu0 0
        %1710 = vmatmul.mubr.bf16.gmra.mrb[0].mxu0 %v1513
        %v1711 = vpop.f32.mrb[0].mxu0
        %v1712 = vadd.f32 %v1539, %v1711
        %v1713 = vpop.f32.mrb[0].mxu0
        %v1714 = vpop.f32.mrb[0].mxu0
        %v1715 = vadd.f32 %v1539, %v1714
        %v1716 = vpop.f32.mrb[0].mxu0
        %1717 = vmatprep.mubr.bf16.mxu0 0
        %1718 = vmatmul.mubr.bf16.gmra.mrb[0].mxu0 %v1514
        %v1719 = vpop.f32.mrb[0].mxu0
        %v1720 = vadd.f32 %v1539, %v1719
        %v1721 = vpop.f32.mrb[0].mxu0
        %v1722 = vpop.f32.mrb[0].mxu0
        %v1723 = vadd.f32 %v1539, %v1722
        %v1724 = vpop.f32.mrb[0].mxu0
        %1725 = vmatprep.mubr.bf16.mxu0 0
        %1726 = vmatmul.mubr.bf16.gmra.mrb[0].mxu0 %v1515
        %v1727 = vpop.f32.mrb[0].mxu0
        %v1728 = vadd.f32 %v1539, %v1727
        %v1729 = vpop.f32.mrb[0].mxu0
        %v1730 = vpop.f32.mrb[0].mxu0
        %v1731 = vadd.f32 %v1539, %v1730
        %v1732 = vpop.f32.mrb[0].mxu0
        %1733 = vmatprep.mubr.bf16.mxu0 0
        %1734 = vmatmul.mubr.bf16.gmra.mrb[0].mxu0 %v1516
        %v1735 = vpop.f32.mrb[0].mxu0
        %v1736 = vadd.f32 %v1539, %v1735
        %v1737 = vpop.f32.mrb[0].mxu0
        %v1738 = vpop.f32.mrb[0].mxu0
        %v1739 = vadd.f32 %v1539, %v1738
        %v1740 = vpop.f32.mrb[0].mxu0
        %1741 = vmatprep.mubr.bf16.mxu0 0
        %1742 = vmatmul.mubr.bf16.gmra.mrb[0].mxu0 %v1517
        %v1743 = vpop.f32.mrb[0].mxu0
        %v1744 = vadd.f32 %v1539, %v1743
        %v1745 = vpop.f32.mrb[0].mxu0
        %v1746 = vpop.f32.mrb[0].mxu0
        %v1747 = vadd.f32 %v1539, %v1746
        %v1748 = vpop.f32.mrb[0].mxu0
        %1749 = vdwg.mxu0
        %v1750 = vmax.f32 %v1624, 0.0
        %v1751 = vmax.f32 %v1627, 0.0
        %v1752 = vmax.f32 %v1632, 0.0
        %v1753 = vmax.f32 %v1635, 0.0
        %v1754 = vmax.f32 %v1640, 0.0
        %v1755 = vmax.f32 %v1643, 0.0
        %v1756 = vmax.f32 %v1648, 0.0
        %v1757 = vmax.f32 %v1651, 0.0
        %v1758 = vmax.f32 %v1656, 0.0
        %v1759 = vmax.f32 %v1659, 0.0
        %v1760 = vmax.f32 %v1664, 0.0
        %v1761 = vmax.f32 %v1667, 0.0
        %v1762 = vmax.f32 %v1672, 0.0
        %v1763 = vmax.f32 %v1675, 0.0
        %v1764 = vmax.f32 %v1680, 0.0
        %v1765 = vmax.f32 %v1683, 0.0
        %v1766 = vmax.f32 %v1688, 0.0
        %v1767 = vmax.f32 %v1691, 0.0
        %v1768 = vmax.f32 %v1696, 0.0
        %v1769 = vmax.f32 %v1699, 0.0
        %v1770 = vmax.f32 %v1704, 0.0
        %v1771 = vmax.f32 %v1707, 0.0
        %v1772 = vmax.f32 %v1712, 0.0
        %v1773 = vmax.f32 %v1715, 0.0
        %v1774 = vmax.f32 %v1720, 0.0
        %v1775 = vmax.f32 %v1723, 0.0
        %v1776 = vmax.f32 %v1728, 0.0
        %v1777 = vmax.f32 %v1731, 0.0
        %v1778 = vmax.f32 %v1736, 0.0
        %v1779 = vmax.f32 %v1739, 0.0
        %v1780 = vmax.f32 %v1744, 0.0
        %v1781 = vmax.f32 %v1747, 0.0
        %v1782 = vpack.c.bf16 %v1751, %v1750
        %v1783 = vpack.c.bf16 %v1753, %v1752
        %v1784 = vpack.c.bf16 %v1755, %v1754
        %v1785 = vpack.c.bf16 %v1757, %v1756
        %v1786 = vpack.c.bf16 %v1759, %v1758
        %v1787 = vpack.c.bf16 %v1761, %v1760
        %v1788 = vpack.c.bf16 %v1763, %v1762
        %v1789 = vpack.c.bf16 %v1765, %v1764
        %v1790 = vpack.c.bf16 %v1767, %v1766
        %v1791 = vpack.c.bf16 %v1769, %v1768
        %v1792 = vpack.c.bf16 %v1771, %v1770
        %v1793 = vpack.c.bf16 %v1773, %v1772
        %v1794 = vpack.c.bf16 %v1775, %v1774
        %v1795 = vpack.c.bf16 %v1777, %v1776
        %v1796 = vpack.c.bf16 %v1779, %v1778
        %v1797 = vpack.c.bf16 %v1781, %v1780
        %v1798 = vld [vmem:[#allocation11] sm:$0xf]
        %v1799 = vld [vmem:[#allocation11 + $0x4] sm:$0xf]
        %v1800 = vld [vmem:[#allocation11 + $0x8] sm:$0xf]
        %v1801 = vld [vmem:[#allocation11 + $0xc] sm:$0xf]
        %v1802 = vld [vmem:[#allocation11 + $0x10] sm:$0xf]
        %v1803 = vld [vmem:[#allocation11 + $0x14] sm:$0xf]
        %v1804 = vld [vmem:[#allocation11 + $0x18] sm:$0xf]
        %v1805 = vld [vmem:[#allocation11 + $0x1c] sm:$0xf]
        %v1806 = vld [vmem:[#allocation11 + $0x20] sm:$0xf]
        %v1807 = vld [vmem:[#allocation11 + $0x24] sm:$0xf]
        %v1808 = vld [vmem:[#allocation11 + $0x28] sm:$0xf]
        %v1809 = vld [vmem:[#allocation11 + $0x2c] sm:$0xf]
        %v1810 = vld [vmem:[#allocation11 + $0x30] sm:$0xf]
        %v1811 = vld [vmem:[#allocation11 + $0x34] sm:$0xf]
        %v1812 = vld [vmem:[#allocation11 + $0x38] sm:$0xf]
        %v1813 = vld [vmem:[#allocation11 + $0x3c] sm:$0xf]
        %v1814 = vld [vmem:[#allocation13] sm:$0x1]
        %v1816 = vlaneseq
        %v1817 = vshrl.u32 %v1816, 7
        %v1818 = vsub.s32 0, %v1817
        %v1819 = vrot.slane %v1814, %v1818
        %v1837 = vunpack.c.l.b16 %v1798
        %v1838 = vunpack.c.l.b16 %v1799
        %v1839 = vunpack.c.l.b16 %v1800
        %v1840 = vunpack.c.l.b16 %v1801
        %v1841 = vunpack.c.l.b16 %v1802
        %v1842 = vunpack.c.l.b16 %v1803
        %v1843 = vunpack.c.l.b16 %v1804
        %v1844 = vunpack.c.l.b16 %v1805
        %v1845 = vunpack.c.l.b16 %v1806
        %v1846 = vunpack.c.l.b16 %v1807
        %v1847 = vunpack.c.l.b16 %v1808
        %v1848 = vunpack.c.l.b16 %v1809
        %v1849 = vunpack.c.l.b16 %v1810
        %v1850 = vunpack.c.l.b16 %v1811
        %v1851 = vunpack.c.l.b16 %v1812
        %v1852 = vunpack.c.l.b16 %v1813
        %v1853 = vpack.c.b16 %v1838, %v1837
        %v1854 = vpack.c.b16 %v1840, %v1839
        %v1855 = vpack.c.b16 %v1842, %v1841
        %v1856 = vpack.c.b16 %v1844, %v1843
        %v1857 = vpack.c.b16 %v1846, %v1845
        %v1858 = vpack.c.b16 %v1848, %v1847
        %v1859 = vpack.c.b16 %v1850, %v1849
        %v1860 = vpack.c.b16 %v1852, %v1851
        %1869 = vmatprep.subr.bf16.mxu0 0
        %1870 = vmatpush1.bf16.msra.mxu0 %v1853
        %1871 = vmatprep.subr.bf16.mxu0 0
        %1872 = vmatpush1.bf16.msra.mxu0 %v1854
        %1873 = vmatprep.subr.bf16.mxu0 0
        %1874 = vmatpush1.bf16.msra.mxu0 %v1855
        %1875 = vmatprep.subr.bf16.mxu0 0
        %1876 = vmatpush1.bf16.msra.mxu0 %v1856
        %1877 = vmatprep.subr.bf16.mxu0 0
        %1878 = vmatpush1.bf16.msra.mxu0 %v1857
        %1879 = vmatprep.subr.bf16.mxu0 0
        %1880 = vmatpush1.bf16.msra.mxu0 %v1858
        %1881 = vmatprep.subr.bf16.mxu0 0
        %1882 = vmatpush1.bf16.msra.mxu0 %v1859
        %1883 = vmatprep.subr.bf16.mxu0 0
        %1884 = vmatpush1.bf16.msra.mxu0 %v1860
        %1885 = vmatprep.subr.bf16.mxu0 0
        %1886 = vmatpush1.bf16.msra.mxu0 0
        %1887 = vmatprep.subr.bf16.mxu0 0
        %1888 = vmatpush1.bf16.msra.mxu0 0
        %1889 = vmatprep.subr.bf16.mxu0 0
        %1890 = vmatpush1.bf16.msra.mxu0 0
        %1891 = vmatprep.subr.bf16.mxu0 0
        %1892 = vmatpush1.bf16.msra.mxu0 0
        %1893 = vmatprep.subr.bf16.mxu0 0
        %1894 = vmatpush1.bf16.msra.mxu0 0
        %1895 = vmatprep.subr.bf16.mxu0 0
        %1896 = vmatpush1.bf16.msra.mxu0 0
        %1897 = vmatprep.subr.bf16.mxu0 0
        %1898 = vmatpush1.bf16.msra.mxu0 0
        %1899 = vmatprep.subr.bf16.mxu0 0
        %1900 = vmatpush1.bf16.msra.mxu0 0
        %1901 = vmatprep.mubr.bf16.mxu0 0
        %1902 = vmatmul.mubr.bf16.gmra.mrb[0].mxu0 %v1782
        %v1903 = vpop.f32.mrb[0].mxu0
        %v1904 = vadd.f32 %v1819, %v1903
        %v1905 = vpop.f32.mrb[0].mxu0
        %v1906 = vpop.f32.mrb[0].mxu0
        %v1907 = vadd.f32 %v1819, %v1906
        %v1908 = vpop.f32.mrb[0].mxu0
        %1909 = vmatprep.mubr.bf16.mxu0 0
        %1910 = vmatmul.mubr.bf16.gmra.mrb[0].mxu0 %v1783
        %v1911 = vpop.f32.mrb[0].mxu0
        %v1912 = vadd.f32 %v1819, %v1911
        %v1913 = vpop.f32.mrb[0].mxu0
        %v1914 = vpop.f32.mrb[0].mxu0
        %v1915 = vadd.f32 %v1819, %v1914
        %v1916 = vpop.f32.mrb[0].mxu0
        %1917 = vmatprep.mubr.bf16.mxu0 0
        %1918 = vmatmul.mubr.bf16.gmra.mrb[0].mxu0 %v1784
        %v1919 = vpop.f32.mrb[0].mxu0
        %v1920 = vadd.f32 %v1819, %v1919
        %v1921 = vpop.f32.mrb[0].mxu0
        %v1922 = vpop.f32.mrb[0].mxu0
        %v1923 = vadd.f32 %v1819, %v1922
        %v1924 = vpop.f32.mrb[0].mxu0
        %1925 = vmatprep.mubr.bf16.mxu0 0
        %1926 = vmatmul.mubr.bf16.gmra.mrb[0].mxu0 %v1785
        %v1927 = vpop.f32.mrb[0].mxu0
        %v1928 = vadd.f32 %v1819, %v1927
        %v1929 = vpop.f32.mrb[0].mxu0
        %v1930 = vpop.f32.mrb[0].mxu0
        %v1931 = vadd.f32 %v1819, %v1930
        %v1932 = vpop.f32.mrb[0].mxu0
        %1933 = vmatprep.mubr.bf16.mxu0 0
        %1934 = vmatmul.mubr.bf16.gmra.mrb[0].mxu0 %v1786
        %v1935 = vpop.f32.mrb[0].mxu0
        %v1936 = vadd.f32 %v1819, %v1935
        %v1937 = vpop.f32.mrb[0].mxu0
        %v1938 = vpop.f32.mrb[0].mxu0
        %v1939 = vadd.f32 %v1819, %v1938
        %v1940 = vpop.f32.mrb[0].mxu0
        %1941 = vmatprep.mubr.bf16.mxu0 0
        %1942 = vmatmul.mubr.bf16.gmra.mrb[0].mxu0 %v1787
        %v1943 = vpop.f32.mrb[0].mxu0
        %v1944 = vadd.f32 %v1819, %v1943
        %v1945 = vpop.f32.mrb[0].mxu0
        %v1946 = vpop.f32.mrb[0].mxu0
        %v1947 = vadd.f32 %v1819, %v1946
        %v1948 = vpop.f32.mrb[0].mxu0
        %1949 = vmatprep.mubr.bf16.mxu0 0
        %1950 = vmatmul.mubr.bf16.gmra.mrb[0].mxu0 %v1788
        %v1951 = vpop.f32.mrb[0].mxu0
        %v1952 = vadd.f32 %v1819, %v1951
        %v1953 = vpop.f32.mrb[0].mxu0
        %v1954 = vpop.f32.mrb[0].mxu0
        %v1955 = vadd.f32 %v1819, %v1954
        %v1956 = vpop.f32.mrb[0].mxu0
        %1957 = vmatprep.mubr.bf16.mxu0 0
        %1958 = vmatmul.mubr.bf16.gmra.mrb[0].mxu0 %v1789
        %v1959 = vpop.f32.mrb[0].mxu0
        %v1960 = vadd.f32 %v1819, %v1959
        %v1961 = vpop.f32.mrb[0].mxu0
        %v1962 = vpop.f32.mrb[0].mxu0
        %v1963 = vadd.f32 %v1819, %v1962
        %v1964 = vpop.f32.mrb[0].mxu0
        %1965 = vmatprep.mubr.bf16.mxu0 0
        %1966 = vmatmul.mubr.bf16.gmra.mrb[0].mxu0 %v1790
        %v1967 = vpop.f32.mrb[0].mxu0
        %v1968 = vadd.f32 %v1819, %v1967
        %v1969 = vpop.f32.mrb[0].mxu0
        %v1970 = vpop.f32.mrb[0].mxu0
        %v1971 = vadd.f32 %v1819, %v1970
        %v1972 = vpop.f32.mrb[0].mxu0
        %1973 = vmatprep.mubr.bf16.mxu0 0
        %1974 = vmatmul.mubr.bf16.gmra.mrb[0].mxu0 %v1791
        %v1975 = vpop.f32.mrb[0].mxu0
        %v1976 = vadd.f32 %v1819, %v1975
        %v1977 = vpop.f32.mrb[0].mxu0
        %v1978 = vpop.f32.mrb[0].mxu0
        %v1979 = vadd.f32 %v1819, %v1978
        %v1980 = vpop.f32.mrb[0].mxu0
        %1981 = vmatprep.mubr.bf16.mxu0 0
        %1982 = vmatmul.mubr.bf16.gmra.mrb[0].mxu0 %v1792
        %v1983 = vpop.f32.mrb[0].mxu0
        %v1984 = vadd.f32 %v1819, %v1983
        %v1985 = vpop.f32.mrb[0].mxu0
        %v1986 = vpop.f32.mrb[0].mxu0
        %v1987 = vadd.f32 %v1819, %v1986
        %v1988 = vpop.f32.mrb[0].mxu0
        %1989 = vmatprep.mubr.bf16.mxu0 0
        %1990 = vmatmul.mubr.bf16.gmra.mrb[0].mxu0 %v1793
        %v1991 = vpop.f32.mrb[0].mxu0
        %v1992 = vadd.f32 %v1819, %v1991
        %v1993 = vpop.f32.mrb[0].mxu0
        %v1994 = vpop.f32.mrb[0].mxu0
        %v1995 = vadd.f32 %v1819, %v1994
        %v1996 = vpop.f32.mrb[0].mxu0
        %1997 = vmatprep.mubr.bf16.mxu0 0
        %1998 = vmatmul.mubr.bf16.gmra.mrb[0].mxu0 %v1794
        %v1999 = vpop.f32.mrb[0].mxu0
        %v2000 = vadd.f32 %v1819, %v1999
        %v2001 = vpop.f32.mrb[0].mxu0
        %v2002 = vpop.f32.mrb[0].mxu0
        %v2003 = vadd.f32 %v1819, %v2002
        %v2004 = vpop.f32.mrb[0].mxu0
        %2005 = vmatprep.mubr.bf16.mxu0 0
        %2006 = vmatmul.mubr.bf16.gmra.mrb[0].mxu0 %v1795
        %v2007 = vpop.f32.mrb[0].mxu0
        %v2008 = vadd.f32 %v1819, %v2007
        %v2009 = vpop.f32.mrb[0].mxu0
        %v2010 = vpop.f32.mrb[0].mxu0
        %v2011 = vadd.f32 %v1819, %v2010
        %v2012 = vpop.f32.mrb[0].mxu0
        %2013 = vmatprep.mubr.bf16.mxu0 0
        %2014 = vmatmul.mubr.bf16.gmra.mrb[0].mxu0 %v1796
        %v2015 = vpop.f32.mrb[0].mxu0
        %v2016 = vadd.f32 %v1819, %v2015
        %v2017 = vpop.f32.mrb[0].mxu0
        %v2018 = vpop.f32.mrb[0].mxu0
        %v2019 = vadd.f32 %v1819, %v2018
        %v2020 = vpop.f32.mrb[0].mxu0
        %2021 = vmatprep.mubr.bf16.mxu0 0
        %2022 = vmatmul.mubr.bf16.gmra.mrb[0].mxu0 %v1797
        %v2023 = vpop.f32.mrb[0].mxu0
        %v2024 = vadd.f32 %v1819, %v2023
        %v2025 = vpop.f32.mrb[0].mxu0
        %v2026 = vpop.f32.mrb[0].mxu0
        %v2027 = vadd.f32 %v1819, %v2026
        %v2028 = vpop.f32.mrb[0].mxu0
        %2029 = vdwg.mxu0
        %v2030 = vmax.f32 %v1904, 0.0
        %v2031 = vmax.f32 %v1907, 0.0
        %v2032 = vmax.f32 %v1912, 0.0
        %v2033 = vmax.f32 %v1915, 0.0
        %v2034 = vmax.f32 %v1920, 0.0
        %v2035 = vmax.f32 %v1923, 0.0
        %v2036 = vmax.f32 %v1928, 0.0
        %v2037 = vmax.f32 %v1931, 0.0
        %v2038 = vmax.f32 %v1936, 0.0
        %v2039 = vmax.f32 %v1939, 0.0
        %v2040 = vmax.f32 %v1944, 0.0
        %v2041 = vmax.f32 %v1947, 0.0
        %v2042 = vmax.f32 %v1952, 0.0
        %v2043 = vmax.f32 %v1955, 0.0
        %v2044 = vmax.f32 %v1960, 0.0
        %v2045 = vmax.f32 %v1963, 0.0
        %v2046 = vmax.f32 %v1968, 0.0
        %v2047 = vmax.f32 %v1971, 0.0
        %v2048 = vmax.f32 %v1976, 0.0
        %v2049 = vmax.f32 %v1979, 0.0
        %v2050 = vmax.f32 %v1984, 0.0
        %v2051 = vmax.f32 %v1987, 0.0
        %v2052 = vmax.f32 %v1992, 0.0
        %v2053 = vmax.f32 %v1995, 0.0
        %v2054 = vmax.f32 %v2000, 0.0
        %v2055 = vmax.f32 %v2003, 0.0
        %v2056 = vmax.f32 %v2008, 0.0
        %v2057 = vmax.f32 %v2011, 0.0
        %v2058 = vmax.f32 %v2016, 0.0
        %v2059 = vmax.f32 %v2019, 0.0
        %v2060 = vmax.f32 %v2024, 0.0
        %v2061 = vmax.f32 %v2027, 0.0
        %v2062 = vpack.c.bf16 %v2031, %v2030
        %v2063 = vpack.c.bf16 %v2033, %v2032
        %v2064 = vpack.c.bf16 %v2035, %v2034
        %v2065 = vpack.c.bf16 %v2037, %v2036
        %v2066 = vpack.c.bf16 %v2039, %v2038
        %v2067 = vpack.c.bf16 %v2041, %v2040
        %v2068 = vpack.c.bf16 %v2043, %v2042
        %v2069 = vpack.c.bf16 %v2045, %v2044
        %v2070 = vpack.c.bf16 %v2047, %v2046
        %v2071 = vpack.c.bf16 %v2049, %v2048
        %v2072 = vpack.c.bf16 %v2051, %v2050
        %v2073 = vpack.c.bf16 %v2053, %v2052
        %v2074 = vpack.c.bf16 %v2055, %v2054
        %v2075 = vpack.c.bf16 %v2057, %v2056
        %v2076 = vpack.c.bf16 %v2059, %v2058
        %v2077 = vpack.c.bf16 %v2061, %v2060
        %v2078 = vld [vmem:[#allocation14] sm:$0xff]
        %v2079 = vld [vmem:[#allocation14 + $0x8] sm:$0xff]
        %v2080 = vld [vmem:[#allocation14 + $0x10] sm:$0xff]
        %v2081 = vld [vmem:[#allocation14 + $0x18] sm:$0xff]
        %v2082 = vld [vmem:[#allocation14 + $0x20] sm:$0xff]
        %v2083 = vld [vmem:[#allocation14 + $0x28] sm:$0xff]
        %v2084 = vld [vmem:[#allocation14 + $0x30] sm:$0xff]
        %v2085 = vld [vmem:[#allocation14 + $0x38] sm:$0xff]
        %v2086 = vld [vmem:[#allocation14 + $0x40] sm:$0xff]
        %v2087 = vld [vmem:[#allocation14 + $0x48] sm:$0xff]
        %v2088 = vld [vmem:[#allocation14 + $0x50] sm:$0xff]
        %v2089 = vld [vmem:[#allocation14 + $0x58] sm:$0xff]
        %v2090 = vld [vmem:[#allocation14 + $0x60] sm:$0xff]
        %v2091 = vld [vmem:[#allocation14 + $0x68] sm:$0xff]
        %v2092 = vld [vmem:[#allocation14 + $0x70] sm:$0xff]
        %v2093 = vld [vmem:[#allocation14 + $0x78] sm:$0xff]
        %v2094 = vld [vmem:[#allocation16] sm:$0x3]
        %v2096 = vlaneseq
        %v2097 = vshrl.u32 %v2096, 7
        %v2098 = vsub.s32 0, %v2097
        %v2099 = vrot.slane %v2094, %v2098
        %v2100 = vlaneseq
        %v2101 = vshrl.u32 %v2100, 7
        %v2102 = vsub.s32 1, %v2101
        %v2103 = vrot.slane %v2094, %v2102
        %v2122 = vunpack.c.l.b16 %v2078
        %v2123 = vunpack.c.h.b16 %v2078
        %v2124 = vunpack.c.l.b16 %v2079
        %v2125 = vunpack.c.h.b16 %v2079
        %v2126 = vunpack.c.l.b16 %v2080
        %v2127 = vunpack.c.h.b16 %v2080
        %v2128 = vunpack.c.l.b16 %v2081
        %v2129 = vunpack.c.h.b16 %v2081
        %v2130 = vunpack.c.l.b16 %v2082
        %v2131 = vunpack.c.h.b16 %v2082
        %v2132 = vunpack.c.l.b16 %v2083
        %v2133 = vunpack.c.h.b16 %v2083
        %v2134 = vunpack.c.l.b16 %v2084
        %v2135 = vunpack.c.h.b16 %v2084
        %v2136 = vunpack.c.l.b16 %v2085
        %v2137 = vunpack.c.h.b16 %v2085
        %v2138 = vunpack.c.l.b16 %v2086
        %v2139 = vunpack.c.h.b16 %v2086
        %v2140 = vunpack.c.l.b16 %v2087
        %v2141 = vunpack.c.h.b16 %v2087
        %v2142 = vunpack.c.l.b16 %v2088
        %v2143 = vunpack.c.h.b16 %v2088
        %v2144 = vunpack.c.l.b16 %v2089
        %v2145 = vunpack.c.h.b16 %v2089
        %v2146 = vunpack.c.l.b16 %v2090
        %v2147 = vunpack.c.h.b16 %v2090
        %v2148 = vunpack.c.l.b16 %v2091
        %v2149 = vunpack.c.h.b16 %v2091
        %v2150 = vunpack.c.l.b16 %v2092
        %v2151 = vunpack.c.h.b16 %v2092
        %v2152 = vunpack.c.l.b16 %v2093
        %v2153 = vunpack.c.h.b16 %v2093
        %v2154 = vpack.c.b16 %v2124, %v2122
        %v2155 = vpack.c.b16 %v2125, %v2123
        %v2156 = vpack.c.b16 %v2128, %v2126
        %v2157 = vpack.c.b16 %v2129, %v2127
        %v2158 = vpack.c.b16 %v2132, %v2130
        %v2159 = vpack.c.b16 %v2133, %v2131
        %v2160 = vpack.c.b16 %v2136, %v2134
        %v2161 = vpack.c.b16 %v2137, %v2135
        %v2162 = vpack.c.b16 %v2140, %v2138
        %v2163 = vpack.c.b16 %v2141, %v2139
        %v2164 = vpack.c.b16 %v2144, %v2142
        %v2165 = vpack.c.b16 %v2145, %v2143
        %v2166 = vpack.c.b16 %v2148, %v2146
        %v2167 = vpack.c.b16 %v2149, %v2147
        %v2168 = vpack.c.b16 %v2152, %v2150
        %v2169 = vpack.c.b16 %v2153, %v2151
        %2186 = vmatprep.subr.bf16.mxu0 %v2155
        %2187 = vmatpush1.bf16.msra.mxu0 %v2154
        %2188 = vmatprep.subr.bf16.mxu0 %v2157
        %2189 = vmatpush1.bf16.msra.mxu0 %v2156
        %2190 = vmatprep.subr.bf16.mxu0 %v2159
        %2191 = vmatpush1.bf16.msra.mxu0 %v2158
        %2192 = vmatprep.subr.bf16.mxu0 %v2161
        %2193 = vmatpush1.bf16.msra.mxu0 %v2160
        %2194 = vmatprep.subr.bf16.mxu0 %v2163
        %2195 = vmatpush1.bf16.msra.mxu0 %v2162
        %2196 = vmatprep.subr.bf16.mxu0 %v2165
        %2197 = vmatpush1.bf16.msra.mxu0 %v2164
        %2198 = vmatprep.subr.bf16.mxu0 %v2167
        %2199 = vmatpush1.bf16.msra.mxu0 %v2166
        %2200 = vmatprep.subr.bf16.mxu0 %v2169
        %2201 = vmatpush1.bf16.msra.mxu0 %v2168
        %2202 = vmatprep.subr.bf16.mxu0 0
        %2203 = vmatpush1.bf16.msra.mxu0 0
        %2204 = vmatprep.subr.bf16.mxu0 0
        %2205 = vmatpush1.bf16.msra.mxu0 0
        %2206 = vmatprep.subr.bf16.mxu0 0
        %2207 = vmatpush1.bf16.msra.mxu0 0
        %2208 = vmatprep.subr.bf16.mxu0 0
        %2209 = vmatpush1.bf16.msra.mxu0 0
        %2210 = vmatprep.subr.bf16.mxu0 0
        %2211 = vmatpush1.bf16.msra.mxu0 0
        %2212 = vmatprep.subr.bf16.mxu0 0
        %2213 = vmatpush1.bf16.msra.mxu0 0
        %2214 = vmatprep.subr.bf16.mxu0 0
        %2215 = vmatpush1.bf16.msra.mxu0 0
        %2216 = vmatprep.subr.bf16.mxu0 0
        %2217 = vmatpush1.bf16.msra.mxu0 0
        %2218 = vmatprep.mubr.bf16.mxu0 0
        %2219 = vmatmul.mubr.bf16.gmra.mrb[0].mxu0 %v2062
        %v2220 = vpop.f32.mrb[0].mxu0
        %v2221 = vadd.f32 %v2099, %v2220
        %v2222 = vpop.f32.mrb[0].mxu0
        %v2223 = vadd.f32 %v2103, %v2222
        %v2224 = vpop.f32.mrb[0].mxu0
        %v2225 = vadd.f32 %v2099, %v2224
        %v2226 = vpop.f32.mrb[0].mxu0
        %v2227 = vadd.f32 %v2103, %v2226
        %2228 = vmatprep.mubr.bf16.mxu0 0
        %2229 = vmatmul.mubr.bf16.gmra.mrb[0].mxu0 %v2063
        %v2230 = vpop.f32.mrb[0].mxu0
        %v2231 = vadd.f32 %v2099, %v2230
        %v2232 = vpop.f32.mrb[0].mxu0
        %v2233 = vadd.f32 %v2103, %v2232
        %v2234 = vpop.f32.mrb[0].mxu0
        %v2235 = vadd.f32 %v2099, %v2234
        %v2236 = vpop.f32.mrb[0].mxu0
        %v2237 = vadd.f32 %v2103, %v2236
        %2238 = vmatprep.mubr.bf16.mxu0 0
        %2239 = vmatmul.mubr.bf16.gmra.mrb[0].mxu0 %v2064
        %v2240 = vpop.f32.mrb[0].mxu0
        %v2241 = vadd.f32 %v2099, %v2240
        %v2242 = vpop.f32.mrb[0].mxu0
        %v2243 = vadd.f32 %v2103, %v2242
        %v2244 = vpop.f32.mrb[0].mxu0
        %v2245 = vadd.f32 %v2099, %v2244
        %v2246 = vpop.f32.mrb[0].mxu0
        %v2247 = vadd.f32 %v2103, %v2246
        %2248 = vmatprep.mubr.bf16.mxu0 0
        %2249 = vmatmul.mubr.bf16.gmra.mrb[0].mxu0 %v2065
        %v2250 = vpop.f32.mrb[0].mxu0
        %v2251 = vadd.f32 %v2099, %v2250
        %v2252 = vpop.f32.mrb[0].mxu0
        %v2253 = vadd.f32 %v2103, %v2252
        %v2254 = vpop.f32.mrb[0].mxu0
        %v2255 = vadd.f32 %v2099, %v2254
        %v2256 = vpop.f32.mrb[0].mxu0
        %v2257 = vadd.f32 %v2103, %v2256
        %2258 = vmatprep.mubr.bf16.mxu0 0
        %2259 = vmatmul.mubr.bf16.gmra.mrb[0].mxu0 %v2066
        %v2260 = vpop.f32.mrb[0].mxu0
        %v2261 = vadd.f32 %v2099, %v2260
        %v2262 = vpop.f32.mrb[0].mxu0
        %v2263 = vadd.f32 %v2103, %v2262
        %v2264 = vpop.f32.mrb[0].mxu0
        %v2265 = vadd.f32 %v2099, %v2264
        %v2266 = vpop.f32.mrb[0].mxu0
        %v2267 = vadd.f32 %v2103, %v2266
        %2268 = vmatprep.mubr.bf16.mxu0 0
        %2269 = vmatmul.mubr.bf16.gmra.mrb[0].mxu0 %v2067
        %v2270 = vpop.f32.mrb[0].mxu0
        %v2271 = vadd.f32 %v2099, %v2270
        %v2272 = vpop.f32.mrb[0].mxu0
        %v2273 = vadd.f32 %v2103, %v2272
        %v2274 = vpop.f32.mrb[0].mxu0
        %v2275 = vadd.f32 %v2099, %v2274
        %v2276 = vpop.f32.mrb[0].mxu0
        %v2277 = vadd.f32 %v2103, %v2276
        %2278 = vmatprep.mubr.bf16.mxu0 0
        %2279 = vmatmul.mubr.bf16.gmra.mrb[0].mxu0 %v2068
        %v2280 = vpop.f32.mrb[0].mxu0
        %v2281 = vadd.f32 %v2099, %v2280
        %v2282 = vpop.f32.mrb[0].mxu0
        %v2283 = vadd.f32 %v2103, %v2282
        %v2284 = vpop.f32.mrb[0].mxu0
        %v2285 = vadd.f32 %v2099, %v2284
        %v2286 = vpop.f32.mrb[0].mxu0
        %v2287 = vadd.f32 %v2103, %v2286
        %2288 = vmatprep.mubr.bf16.mxu0 0
        %2289 = vmatmul.mubr.bf16.gmra.mrb[0].mxu0 %v2069
        %v2290 = vpop.f32.mrb[0].mxu0
        %v2291 = vadd.f32 %v2099, %v2290
        %v2292 = vpop.f32.mrb[0].mxu0
        %v2293 = vadd.f32 %v2103, %v2292
        %v2294 = vpop.f32.mrb[0].mxu0
        %v2295 = vadd.f32 %v2099, %v2294
        %v2296 = vpop.f32.mrb[0].mxu0
        %v2297 = vadd.f32 %v2103, %v2296
        %2298 = vmatprep.mubr.bf16.mxu0 0
        %2299 = vmatmul.mubr.bf16.gmra.mrb[0].mxu0 %v2070
        %v2300 = vpop.f32.mrb[0].mxu0
        %v2301 = vadd.f32 %v2099, %v2300
        %v2302 = vpop.f32.mrb[0].mxu0
        %v2303 = vadd.f32 %v2103, %v2302
        %v2304 = vpop.f32.mrb[0].mxu0
        %v2305 = vadd.f32 %v2099, %v2304
        %v2306 = vpop.f32.mrb[0].mxu0
        %v2307 = vadd.f32 %v2103, %v2306
        %2308 = vmatprep.mubr.bf16.mxu0 0
        %2309 = vmatmul.mubr.bf16.gmra.mrb[0].mxu0 %v2071
        %v2310 = vpop.f32.mrb[0].mxu0
        %v2311 = vadd.f32 %v2099, %v2310
        %v2312 = vpop.f32.mrb[0].mxu0
        %v2313 = vadd.f32 %v2103, %v2312
        %v2314 = vpop.f32.mrb[0].mxu0
        %v2315 = vadd.f32 %v2099, %v2314
        %v2316 = vpop.f32.mrb[0].mxu0
        %v2317 = vadd.f32 %v2103, %v2316
        %2318 = vmatprep.mubr.bf16.mxu0 0
        %2319 = vmatmul.mubr.bf16.gmra.mrb[0].mxu0 %v2072
        %v2320 = vpop.f32.mrb[0].mxu0
        %v2321 = vadd.f32 %v2099, %v2320
        %v2322 = vpop.f32.mrb[0].mxu0
        %v2323 = vadd.f32 %v2103, %v2322
        %v2324 = vpop.f32.mrb[0].mxu0
        %v2325 = vadd.f32 %v2099, %v2324
        %v2326 = vpop.f32.mrb[0].mxu0
        %v2327 = vadd.f32 %v2103, %v2326
        %2328 = vmatprep.mubr.bf16.mxu0 0
        %2329 = vmatmul.mubr.bf16.gmra.mrb[0].mxu0 %v2073
        %v2330 = vpop.f32.mrb[0].mxu0
        %v2331 = vadd.f32 %v2099, %v2330
        %v2332 = vpop.f32.mrb[0].mxu0
        %v2333 = vadd.f32 %v2103, %v2332
        %v2334 = vpop.f32.mrb[0].mxu0
        %v2335 = vadd.f32 %v2099, %v2334
        %v2336 = vpop.f32.mrb[0].mxu0
        %v2337 = vadd.f32 %v2103, %v2336
        %2338 = vmatprep.mubr.bf16.mxu0 0
        %2339 = vmatmul.mubr.bf16.gmra.mrb[0].mxu0 %v2074
        %v2340 = vpop.f32.mrb[0].mxu0
        %v2341 = vadd.f32 %v2099, %v2340
        %v2342 = vpop.f32.mrb[0].mxu0
        %v2343 = vadd.f32 %v2103, %v2342
        %v2344 = vpop.f32.mrb[0].mxu0
        %v2345 = vadd.f32 %v2099, %v2344
        %v2346 = vpop.f32.mrb[0].mxu0
        %v2347 = vadd.f32 %v2103, %v2346
        %2348 = vmatprep.mubr.bf16.mxu0 0
        %2349 = vmatmul.mubr.bf16.gmra.mrb[0].mxu0 %v2075
        %v2350 = vpop.f32.mrb[0].mxu0
        %v2351 = vadd.f32 %v2099, %v2350
        %v2352 = vpop.f32.mrb[0].mxu0
        %v2353 = vadd.f32 %v2103, %v2352
        %v2354 = vpop.f32.mrb[0].mxu0
        %v2355 = vadd.f32 %v2099, %v2354
        %v2356 = vpop.f32.mrb[0].mxu0
        %v2357 = vadd.f32 %v2103, %v2356
        %2358 = vmatprep.mubr.bf16.mxu0 0
        %2359 = vmatmul.mubr.bf16.gmra.mrb[0].mxu0 %v2076
        %v2360 = vpop.f32.mrb[0].mxu0
        %v2361 = vadd.f32 %v2099, %v2360
        %v2362 = vpop.f32.mrb[0].mxu0
        %v2363 = vadd.f32 %v2103, %v2362
        %v2364 = vpop.f32.mrb[0].mxu0
        %v2365 = vadd.f32 %v2099, %v2364
        %v2366 = vpop.f32.mrb[0].mxu0
        %v2367 = vadd.f32 %v2103, %v2366
        %2368 = vmatprep.mubr.bf16.mxu0 0
        %2369 = vmatmul.mubr.bf16.gmra.mrb[0].mxu0 %v2077
        %v2370 = vpop.f32.mrb[0].mxu0
        %v2371 = vadd.f32 %v2099, %v2370
        %v2372 = vpop.f32.mrb[0].mxu0
        %v2373 = vadd.f32 %v2103, %v2372
        %v2374 = vpop.f32.mrb[0].mxu0
        %v2375 = vadd.f32 %v2099, %v2374
        %v2376 = vpop.f32.mrb[0].mxu0
        %v2377 = vadd.f32 %v2103, %v2376
        %2378 = vdwg.mxu0
        %2379 = vst [vmem:[%s490] sm:$0xff] %v2221
        %2380 = vst [vmem:[%s490 + $0x8] sm:$0xff] %v2225
        %2381 = vst [vmem:[%s490 + $0x10] sm:$0xff] %v2231
        %2382 = vst [vmem:[%s490 + $0x18] sm:$0xff] %v2235
        %2383 = vst [vmem:[%s490 + $0x20] sm:$0xff] %v2241
        %2384 = vst [vmem:[%s490 + $0x28] sm:$0xff] %v2245
        %2385 = vst [vmem:[%s490 + $0x30] sm:$0xff] %v2251
        %2386 = vst [vmem:[%s490 + $0x38] sm:$0xff] %v2255
        %2387 = vst [vmem:[%s490 + $0x40] sm:$0xff] %v2261
        %2388 = vst [vmem:[%s490 + $0x48] sm:$0xff] %v2265
        %2389 = vst [vmem:[%s490 + $0x50] sm:$0xff] %v2271
        %2390 = vst [vmem:[%s490 + $0x58] sm:$0xff] %v2275
        %2391 = vst [vmem:[%s490 + $0x60] sm:$0xff] %v2281
        %2392 = vst [vmem:[%s490 + $0x68] sm:$0xff] %v2285
        %2393 = vst [vmem:[%s490 + $0x70] sm:$0xff] %v2291
        %2394 = vst [vmem:[%s490 + $0x78] sm:$0xff] %v2295
        %2395 = vst [vmem:[%s490 + $0x80] sm:$0xff] %v2301
        %2396 = vst [vmem:[%s490 + $0x88] sm:$0xff] %v2305
        %2397 = vst [vmem:[%s490 + $0x90] sm:$0xff] %v2311
        %2398 = vst [vmem:[%s490 + $0x98] sm:$0xff] %v2315
        %2399 = vst [vmem:[%s490 + $0xa0] sm:$0xff] %v2321
        %2400 = vst [vmem:[%s490 + $0xa8] sm:$0xff] %v2325
        %2401 = vst [vmem:[%s490 + $0xb0] sm:$0xff] %v2331
        %2402 = vst [vmem:[%s490 + $0xb8] sm:$0xff] %v2335
        %2403 = vst [vmem:[%s490 + $0xc0] sm:$0xff] %v2341
        %2404 = vst [vmem:[%s490 + $0xc8] sm:$0xff] %v2345
        %2405 = vst [vmem:[%s490 + $0xd0] sm:$0xff] %v2351
        %2406 = vst [vmem:[%s490 + $0xd8] sm:$0xff] %v2355
        %2407 = vst [vmem:[%s490 + $0xe0] sm:$0xff] %v2361
        %2408 = vst [vmem:[%s490 + $0xe8] sm:$0xff] %v2365
        %2409 = vst [vmem:[%s490 + $0xf0] sm:$0xff] %v2371
        %2410 = vst [vmem:[%s490 + $0xf8] sm:$0xff] %v2375
        %v2411 = vmul.f32 %v2223, 0.5
        %v2412 = vmul.f32 %v2227, 0.5
        %v2413 = vmul.f32 %v2233, 0.5
        %v2414 = vmul.f32 %v2237, 0.5
        %v2415 = vmul.f32 %v2243, 0.5
        %v2416 = vmul.f32 %v2247, 0.5
        %v2417 = vmul.f32 %v2253, 0.5
        %v2418 = vmul.f32 %v2257, 0.5
        %v2419 = vmul.f32 %v2263, 0.5
        %v2420 = vmul.f32 %v2267, 0.5
        %v2421 = vmul.f32 %v2273, 0.5
        %v2422 = vmul.f32 %v2277, 0.5
        %v2423 = vmul.f32 %v2283, 0.5
        %v2424 = vmul.f32 %v2287, 0.5
        %v2425 = vmul.f32 %v2293, 0.5
        %v2426 = vmul.f32 %v2297, 0.5
        %v2427 = vmul.f32 %v2303, 0.5
        %v2428 = vmul.f32 %v2307, 0.5
        %v2429 = vmul.f32 %v2313, 0.5
        %v2430 = vmul.f32 %v2317, 0.5
        %v2431 = vmul.f32 %v2323, 0.5
        %v2432 = vmul.f32 %v2327, 0.5
        %v2433 = vmul.f32 %v2333, 0.5
        %v2434 = vmul.f32 %v2337, 0.5
        %v2435 = vmul.f32 %v2343, 0.5
        %v2436 = vmul.f32 %v2347, 0.5
        %v2437 = vmul.f32 %v2353, 0.5
        %v2438 = vmul.f32 %v2357, 0.5
        %v2439 = vmul.f32 %v2363, 0.5
        %v2440 = vmul.f32 %v2367, 0.5
        %v2441 = vmul.f32 %v2373, 0.5
        %v2442 = vmul.f32 %v2377, 0.5
        %v2443 = vmul.f32 %v2411, 1.442695
        %v2444 = vpow.pop %v2443
        %v2445 = vmul.f32 %v2412, 1.442695
        %v2446 = vpow.pop %v2445
        %v2447 = vmul.f32 %v2413, 1.442695
        %v2448 = vpow.pop %v2447
        %v2449 = vmul.f32 %v2414, 1.442695
        %v2450 = vpow.pop %v2449
        %v2451 = vmul.f32 %v2415, 1.442695
        %v2452 = vpow.pop %v2451
        %v2453 = vmul.f32 %v2416, 1.442695
        %v2454 = vpow.pop %v2453
        %v2455 = vmul.f32 %v2417, 1.442695
        %v2456 = vpow.pop %v2455
        %v2457 = vmul.f32 %v2418, 1.442695
        %v2458 = vpow.pop %v2457
        %v2459 = vmul.f32 %v2419, 1.442695
        %v2460 = vpow.pop %v2459
        %v2461 = vmul.f32 %v2420, 1.442695
        %v2462 = vpow.pop %v2461
        %v2463 = vmul.f32 %v2421, 1.442695
        %v2464 = vpow.pop %v2463
        %v2465 = vmul.f32 %v2422, 1.442695
        %v2466 = vpow.pop %v2465
        %v2467 = vmul.f32 %v2423, 1.442695
        %v2468 = vpow.pop %v2467
        %v2469 = vmul.f32 %v2424, 1.442695
        %v2470 = vpow.pop %v2469
        %v2471 = vmul.f32 %v2425, 1.442695
        %v2472 = vpow.pop %v2471
        %v2473 = vmul.f32 %v2426, 1.442695
        %v2474 = vpow.pop %v2473
        %v2475 = vmul.f32 %v2427, 1.442695
        %v2476 = vpow.pop %v2475
        %v2477 = vmul.f32 %v2428, 1.442695
        %v2478 = vpow.pop %v2477
        %v2479 = vmul.f32 %v2429, 1.442695
        %v2480 = vpow.pop %v2479
        %v2481 = vmul.f32 %v2430, 1.442695
        %v2482 = vpow.pop %v2481
        %v2483 = vmul.f32 %v2431, 1.442695
        %v2484 = vpow.pop %v2483
        %v2485 = vmul.f32 %v2432, 1.442695
        %v2486 = vpow.pop %v2485
        %v2487 = vmul.f32 %v2433, 1.442695
        %v2488 = vpow.pop %v2487
        %v2489 = vmul.f32 %v2434, 1.442695
        %v2490 = vpow.pop %v2489
        %v2491 = vmul.f32 %v2435, 1.442695
        %v2492 = vpow.pop %v2491
        %v2493 = vmul.f32 %v2436, 1.442695
        %v2494 = vpow.pop %v2493
        %v2495 = vmul.f32 %v2437, 1.442695
        %v2496 = vpow.pop %v2495
        %v2497 = vmul.f32 %v2438, 1.442695
        %v2498 = vpow.pop %v2497
        %v2499 = vmul.f32 %v2439, 1.442695
        %v2500 = vpow.pop %v2499
        %v2501 = vmul.f32 %v2440, 1.442695
        %v2502 = vpow.pop %v2501
        %v2503 = vmul.f32 %v2441, 1.442695
        %v2504 = vpow.pop %v2503
        %v2505 = vmul.f32 %v2442, 1.442695
        %v2506 = vpow.pop %v2505
        %2507 = vst [vmem:[%s497] sm:$0xff] %v2444
        %2508 = vst [vmem:[%s497 + $0x8] sm:$0xff] %v2446
        %2509 = vst [vmem:[%s497 + $0x10] sm:$0xff] %v2448
        %2510 = vst [vmem:[%s497 + $0x18] sm:$0xff] %v2450
        %2511 = vst [vmem:[%s497 + $0x20] sm:$0xff] %v2452
        %2512 = vst [vmem:[%s497 + $0x28] sm:$0xff] %v2454
        %2513 = vst [vmem:[%s497 + $0x30] sm:$0xff] %v2456
        %2514 = vst [vmem:[%s497 + $0x38] sm:$0xff] %v2458
        %2515 = vst [vmem:[%s497 + $0x40] sm:$0xff] %v2460
        %2516 = vst [vmem:[%s497 + $0x48] sm:$0xff] %v2462
        %2517 = vst [vmem:[%s497 + $0x50] sm:$0xff] %v2464
        %2518 = vst [vmem:[%s497 + $0x58] sm:$0xff] %v2466
        %2519 = vst [vmem:[%s497 + $0x60] sm:$0xff] %v2468
        %2520 = vst [vmem:[%s497 + $0x68] sm:$0xff] %v2470
        %2521 = vst [vmem:[%s497 + $0x70] sm:$0xff] %v2472
        %2522 = vst [vmem:[%s497 + $0x78] sm:$0xff] %v2474
        %2523 = vst [vmem:[%s497 + $0x80] sm:$0xff] %v2476
        %2524 = vst [vmem:[%s497 + $0x88] sm:$0xff] %v2478
        %2525 = vst [vmem:[%s497 + $0x90] sm:$0xff] %v2480
        %2526 = vst [vmem:[%s497 + $0x98] sm:$0xff] %v2482
        %2527 = vst [vmem:[%s497 + $0xa0] sm:$0xff] %v2484
        %2528 = vst [vmem:[%s497 + $0xa8] sm:$0xff] %v2486
        %2529 = vst [vmem:[%s497 + $0xb0] sm:$0xff] %v2488
        %2530 = vst [vmem:[%s497 + $0xb8] sm:$0xff] %v2490
        %2531 = vst [vmem:[%s497 + $0xc0] sm:$0xff] %v2492
        %2532 = vst [vmem:[%s497 + $0xc8] sm:$0xff] %v2494
        %2533 = vst [vmem:[%s497 + $0xd0] sm:$0xff] %v2496
        %2534 = vst [vmem:[%s497 + $0xd8] sm:$0xff] %v2498
        %2535 = vst [vmem:[%s497 + $0xe0] sm:$0xff] %v2500
        %2536 = vst [vmem:[%s497 + $0xe8] sm:$0xff] %v2502
        %2537 = vst [vmem:[%s497 + $0xf0] sm:$0xff] %v2504
        %2538 = vst [vmem:[%s497 + $0xf8] sm:$0xff] %v2506
        %s2539 = sand.u32 %s237, 1
        %s2540 = scalar_lea.sflag [#allocation4], %s2539
        %s2541 = sand.u32 %s237, 1
        %s2542 = smul.addr %s2541, 256
        %s2543 = scalar_lea.vmem [#allocation17], %s2542
        %s2544 = sand.u32 %s263, 1
        %s2545 = scalar_lea.sflag [#allocation19], %s2544
        %s2546 = sand.u32 %s263, 1
        %s2547 = smul.addr %s2546, 256
        %s2548 = scalar_lea.vmem [#allocation18], %s2547
        // Predicated region
        $region93: #{tpu_custom_call.1} parent=55 // pred_check
          %p2549 = pneg %p247
        $region94: #{tpu_custom_call.1} parent=55 // pred_check_branch
          %2551 = sbr.rel (%p2549) target = $region96
        $region95: #{tpu_custom_call.1} parent=55 // pred_region
          %s2552 = smul.u32 32, %s35
          %s2554 = ssub.s32 4096, 4096
          %2555 = vsyncadd %s2540, %s2554
          %s2556 = smul.addr %s2552, 128
          %s2557 = scalar_lea.hbm %s9, %s2556
          %s2558 = sshll.u32 %s2543, 4
          %s2559 = int_to_ptr.vmem [resolvable:$true] %s2558
          %2564 = dma.vmem_to_hbm [thread:$0]  %s2559, 4096, %s2557, %s2540, 128, 128, 8
        $region96: #{tpu_custom_call.1} parent=55 // pred_fallthru
          _
        // Predicated region
        $region97: #{tpu_custom_call.1} parent=55 // pred_check
          %p2565 = pneg %p273
        $region98: #{tpu_custom_call.1} parent=55 // pred_check_branch
          %2567 = sbr.rel (%p2565) target = $region100
        $region99: #{tpu_custom_call.1} parent=55 // pred_region
          %s2568 = smul.u32 32, %s35
          %s2570 = ssub.s32 4096, 4096
          %2571 = vsyncadd %s2545, %s2570
          %s2572 = smul.addr %s2568, 128
          %s2573 = scalar_lea.hbm %s10, %s2572
          %s2574 = sshll.u32 %s2548, 4
          %s2575 = int_to_ptr.vmem [resolvable:$true] %s2574
          %2580 = dma.vmem_to_hbm [thread:$0]  %s2575, 4096, %s2573, %s2545, 128, 128, 8
        $region100: #{tpu_custom_call.1} parent=55 // pred_fallthru
          _
      $region56: #{tpu_custom_call.1} parent=5 // pred_fallthru
        _
      %p2581 = scmp.le.s32.totalorder 2, %s30
      // Predicated region
      $region101: #{tpu_custom_call.1} parent=5 // pred_check
        %p2582 = pneg %p2581
      $region102: #{tpu_custom_call.1} parent=5 // pred_check_branch
        %2584 = sbr.rel (%p2582) target = $region104
      $region103: #{tpu_custom_call.1} parent=5 // pred_region
        %s2585 = ssub.s32 %s30, 2
        // Predicated region
        $region105: #{tpu_custom_call.1} parent=103 // pred_check
          %p2586 = pneg %p253
        $region106: #{tpu_custom_call.1} parent=103 // pred_check_branch
          %2588 = sbr.rel (%p2586) target = $region108
        $region107: #{tpu_custom_call.1} parent=103 // pred_region
          %s2589 = sand.u32 %s238, 1
          %s2590 = scalar_lea.sflag [#allocation4], %s2589
          %s2591 = sand.u32 %s238, 1
          %s2592 = smul.addr %s2591, 256
          %s2593 = scalar_lea.vmem [#allocation17], %s2592
          %2594 = dma.done %s2590, 4096
        $region108: #{tpu_custom_call.1} parent=103 // pred_fallthru
          _
        // Predicated region
        $region109: #{tpu_custom_call.1} parent=103 // pred_check
          %p2595 = pneg %p279
        $region110: #{tpu_custom_call.1} parent=103 // pred_check_branch
          %2597 = sbr.rel (%p2595) target = $region112
        $region111: #{tpu_custom_call.1} parent=103 // pred_region
          %s2598 = sand.u32 %s264, 1
          %s2599 = scalar_lea.sflag [#allocation19], %s2598
          %s2600 = sand.u32 %s264, 1
          %s2601 = smul.addr %s2600, 256
          %s2602 = scalar_lea.vmem [#allocation18], %s2601
          %2603 = dma.done %s2599, 4096
        $region112: #{tpu_custom_call.1} parent=103 // pred_fallthru
          _
      $region104: #{tpu_custom_call.1} parent=5 // pred_fallthru
        _
    $region6: #{tpu_custom_call.1} parent=1 // loop_footer
      %s34 = sadd.s32 1, %s30
    $region7: #{tpu_custom_call.1} parent=1 // loop_footer_branch
      %29 = sbr.rel target = $region3
    $region8: #{tpu_custom_call.1} parent=1 // loop_exit
      _
    %2604 = vsyncpa [#allocation3], 1
    %s2605 = scalar_lea.sflag [#allocation3], 1
    %2606 = vsyncpa %s2605, 1
    %2607 = vsyncpa [#allocation6], 1
    %2608 = vsyncpa [#allocation9], 1
    %2609 = vsyncpa [#allocation12], 1
    %2610 = vsyncpa [#allocation15], 1
    %2611 = vsyncpa [#allocation4], 1
    %s2612 = scalar_lea.sflag [#allocation4], 1
    %2613 = vsyncpa %s2612, 1
    %2614 = vsyncpa [#allocation19], 1
    %s2615 = scalar_lea.sflag [#allocation19], 1
    %2616 = vsyncpa %s2615, 1

</llo_original>
